<compile_context>
chip_gen: v5e
topology: v5e:2x2
jax: 0.10.0
libtpu: 0.0.40
codegen_flags: <defaults>
</compile_context>

<pallas_src>
import functools

import jax
import jax.numpy as jnp
from jax.experimental import pallas as pl
from jax.experimental.pallas import tpu as pltpu


def _comb_kernel(p_ref, t_ref, o_ref, *, theta0, theta, eps):
    """One grid step: TBC independent (H, W) planes -> (TBC, 3) partials.

    Partials per plane: [dice intersection, dice sum(A)+sum(B), 1 - BF1].
    """
    tbc, h, w = p_ref.shape
    r0 = (theta0 - 1) // 2
    r1 = (theta - 1) // 2
    r_max = max(r0, r1)

    # ---- static wrap-around penalties (0 where valid, -inf where the circular
    # roll wrapped), one per (axis, signed shift).  pltpu.roll(x, s)[j] reads
    # x[(j - s) % n], so shift +a is valid iff j >= a and shift -a iff j < n-a.
    row_idx = jax.lax.broadcasted_iota(jnp.int32, (h, w), 0)
    col_idx = jax.lax.broadcasted_iota(jnp.int32, (h, w), 1)
    pen_w = {}
    pen_h = {}
    for a in range(1, r_max + 1):
        pen_w[a] = jnp.where(col_idx >= a, 0.0, -jnp.inf).astype(jnp.float32)
        pen_w[-a] = jnp.where(col_idx < w - a, 0.0, -jnp.inf).astype(jnp.float32)
        pen_h[a] = jnp.where(row_idx >= a, 0.0, -jnp.inf).astype(jnp.float32)
        pen_h[-a] = jnp.where(row_idx < h - a, 0.0, -jnp.inf).astype(jnp.float32)

    def maxpool(x, r):
        """Stride-1 'same' max pool, window 2r+1, implicit -inf padding.

        Separable: lane (W) axis first, then sublane (H) axis.  Per shift the
        cost is one XLU roll + one VPU add + one VPU max.
        """
        m = x
        for s in range(-r, r + 1):
            if s:
                m = jnp.maximum(m, pltpu.roll(x, shift=s % w, axis=1) + pen_w[s])
        out = m
        for s in range(-r, r + 1):
            if s:
                out = jnp.maximum(out, pltpu.roll(m, shift=s % h, axis=0) + pen_h[s])
        return out

    def psum(x):  # full-plane sum -> (1, 1)
        return jnp.sum(x, axis=(0, 1), keepdims=True)

    for i in range(tbc):
        # Load one plane at a time (bounds the live set); cast in VMEM so the
        # inputs stream from HBM in their native dtype.
        p = p_ref[i].astype(jnp.float32)  # (H, W)
        t = t_ref[i].astype(jnp.float32)  # (H, W)

        # ---- BinaryDiceLoss per-plane partial sums ---------------------------
        d_inter = psum(p * t)
        d_ab = psum(p + t)

        # ---- BoundaryLoss per-plane term -------------------------------------
        inv_p = 1.0 - p
        inv_t = 1.0 - t
        pred_b = maxpool(inv_p, r0) - inv_p
        gt_b = maxpool(inv_t, r0) - inv_t
        pred_b_ext = maxpool(pred_b, r1)
        gt_b_ext = maxpool(gt_b, r1)

        prec = psum(pred_b * gt_b_ext) / (psum(pred_b) + eps)
        rec = psum(pred_b_ext * gt_b) / (psum(gt_b) + eps)
        bf1 = 2.0 * prec * rec / (prec + rec + eps)

        o_ref[i:i + 1, 0:1] = d_inter
        o_ref[i:i + 1, 1:2] = d_ab
        o_ref[i:i + 1, 2:3] = 1.0 - bf1


def _pick_planes_per_block(n_planes, h, w, p_bytes, t_bytes):
    """Largest divisor of n_planes whose working set fits a ~40 MiB budget.

    Keeps at least two grid steps when possible so the 'parallel' grid axis can
    be split across TensorCores (v7x megacore).
    """
    plane = h * w
    budget = 40 << 20
    cap = 16 if n_planes < 2 else min(16, max(1, n_planes // 2))
    best = 1
    for tbc in range(1, n_planes + 1):
        if n_planes % tbc or tbc > cap:
            continue
        est = 2 * tbc * plane * (p_bytes + t_bytes) + 20 * plane * 4
        if est <= budget:
            best = tbc
    return best


def comb_loss(predict, target, *, alpha=0.6, smooth=1.0, theta0=3, theta=5):
    """Pallas implementation of CombLoss.forward (NCHW inputs, scalar output)."""
    assert predict.shape == target.shape, "predict/target shapes must match"
    assert predict.ndim == 4, "expected NCHW inputs"
    B, C, H, W = predict.shape
    assert theta0 % 2 == 1 and theta % 2 == 1, "pooling windows must be odd"
    assert H >= theta and W >= theta, "spatial dims must cover the pooling window"

    n_planes = B * C
    p_planes = predict.reshape(n_planes, H, W)
    t_planes = target.reshape(n_planes, H, W)

    p_bytes = jnp.dtype(predict.dtype).itemsize
    t_bytes = jnp.dtype(target.dtype).itemsize
    tbc = _pick_planes_per_block(n_planes, H, W, p_bytes, t_bytes)
    n_blocks = n_planes // tbc

    # Explicit scoped-VMEM limit: enough for the chosen block, capped <= 56 MiB
    # so it stays inside v7x's 64 MiB physical VMEM (v5e/v6e have 128 MiB).
    est = 2 * tbc * H * W * (p_bytes + t_bytes) + 20 * H * W * 4
    vmem_limit = int(min(56 << 20, max(32 << 20, 2 * est)))

    kernel = functools.partial(
        _comb_kernel, theta0=int(theta0), theta=int(theta), eps=1e-7)

    partials = pl.pallas_call(
        kernel,
        out_shape=jax.ShapeDtypeStruct((n_blocks, tbc, 3), jnp.float32),
        grid_spec=pltpu.PrefetchScalarGridSpec(
            num_scalar_prefetch=0,
            grid=(n_blocks,),
            in_specs=[
                pl.BlockSpec((tbc, H, W), lambda i: (i, 0, 0)),
                pl.BlockSpec((tbc, H, W), lambda i: (i, 0, 0)),
            ],
            out_specs=pl.BlockSpec((None, tbc, 3), lambda i: (i, 0, 0)),
        ),
        compiler_params=pltpu.CompilerParams(
            dimension_semantics=("parallel",),   # no cross-step state
            vmem_limit_bytes=vmem_limit,
        ),
    )(p_planes, t_planes)

    # Tiny final combine in the wrapper (a few scalar-ish JAX ops).
    parts = partials.reshape(B, C, 3)
    d_inter_b = jnp.sum(parts[..., 0], axis=1)                 # (B,)
    d_ab_b = jnp.sum(parts[..., 1], axis=1)                    # (B,)
    dice = jnp.mean(1.0 - (2.0 * d_inter_b + smooth) / (d_ab_b + smooth))
    boundary = jnp.mean(parts[..., 2])                         # mean over (n, c)
    return alpha * boundary + (1.0 - alpha) * dice


# --------------------------- pure-JAX reference ------------------------------

def _maxpool2d_ref(x, k):
    r = (k - 1) // 2
    return jax.lax.reduce_window(
        x, -jnp.inf, jax.lax.max,
        window_dimensions=(1, 1, k, k),
        window_strides=(1, 1, 1, 1),
        padding=((0, 0), (0, 0), (r, r), (r, r)))


def _comb_loss_ref(predict, target, *, alpha=0.6, smooth=1.0, theta0=3, theta=5):
    p = predict.astype(jnp.float32)
    t = target.astype(jnp.float32)
    n, c, _, _ = p.shape
    # BoundaryLoss
    gt_b = _maxpool2d_ref(1.0 - t, theta0) - (1.0 - t)
    pred_b = _maxpool2d_ref(1.0 - p, theta0) - (1.0 - p)
    gt_b_ext = _maxpool2d_ref(gt_b, theta)
    pred_b_ext = _maxpool2d_ref(pred_b, theta)
    gt_b_f = gt_b.reshape(n, c, -1)
    pred_b_f = pred_b.reshape(n, c, -1)
    gt_ext_f = gt_b_ext.reshape(n, c, -1)
    pred_ext_f = pred_b_ext.reshape(n, c, -1)
    P = jnp.sum(pred_b_f * gt_ext_f, axis=2) / (jnp.sum(pred_b_f, axis=2) + 1e-7)
    R = jnp.sum(pred_ext_f * gt_b_f, axis=2) / (jnp.sum(gt_b_f, axis=2) + 1e-7)
    BF1 = 2.0 * P * R / (P + R + 1e-7)
    boundary = jnp.mean(1.0 - BF1)
    # BinaryDiceLoss (reduction='mean')
    pf = p.reshape(n, -1)
    tf = t.reshape(n, -1)
    inter = jnp.sum(pf * tf, axis=1)
    dice = 1.0 - (2.0 * inter + smooth) / (jnp.sum(pf, axis=1) + jnp.sum(tf, axis=1) + smooth)
    dice = jnp.mean(dice)
    return alpha * boundary + (1.0 - alpha) * dice


if __name__ == "__main__":
    key = jax.random.PRNGKey(0)
    k1, k2 = jax.random.split(key)

    B, C, H, W = 2, 4, 16, 16
    predict = jax.random.normal(k1, (B, C, H, W), dtype=jnp.float32)           # logits
    target = (jax.random.uniform(k2, (B, C, H, W)) > 0.5).astype(jnp.float32)  # binary mask

    loss = comb_loss(predict, target, alpha=0.6, smooth=1.0)
    loss = jax.block_until_ready(loss)

    ref = _comb_loss_ref(predict, target, alpha=0.6, smooth=1.0)
    assert jnp.allclose(loss, ref, rtol=1e-4, atol=2e-5), (loss, ref)

    print("KERNEL_OK")
</pallas_src>

<mosaic_0001>
module attributes {stable_mosaic.version = 11 : i64} {
  func.func @_comb_kernel(%arg0: i32, %arg1: memref<4x16x16xf32, #tpu.memory_space<vmem>>, %arg2: memref<4x16x16xf32, #tpu.memory_space<vmem>>, %arg3: memref<1x4x3xf32, #tpu.memory_space<vmem>>) attributes {dimension_semantics = [#tpu.dimension_semantics<parallel>], iteration_bounds = array<i64: 2>, scalar_prefetch = 0 : i64, scratch_operands = 0 : i64, tpu.core_type = #tpu.core_type<tc>, window_params = [{transform_indices = @transform_0, window_bounds = array<i64: 4, 16, 16>}, {transform_indices = @transform_1, window_bounds = array<i64: 4, 16, 16>}, {transform_indices = @transform_2, window_bounds = array<i64: 1, 4, 3>}]} {
    %0 = tpu.iota {dimensions = array<i32: 0>} : vector<16x16xi32>
    %1 = tpu.iota {dimensions = array<i32: 1>} : vector<16x16xi32>
    %c1_i32 = arith.constant 1 : i32
    %2 = vector.broadcast %c1_i32 : i32 to vector<16x16xi32>
    %3 = arith.cmpi sge, %1, %2 : vector<16x16xi32>
    %cst = arith.constant 0.000000e+00 : f32
    %cst_0 = arith.constant 0xFF800000 : f32
    %4 = vector.broadcast %cst : f32 to vector<16x16xf32>
    %5 = vector.broadcast %cst_0 : f32 to vector<16x16xf32>
    %6 = arith.select %3, %4, %5 : vector<16x16xi1>, vector<16x16xf32>
    %c15_i32 = arith.constant 15 : i32
    %7 = vector.broadcast %c15_i32 : i32 to vector<16x16xi32>
    %8 = arith.cmpi slt, %1, %7 : vector<16x16xi32>
    %cst_1 = arith.constant 0.000000e+00 : f32
    %cst_2 = arith.constant 0xFF800000 : f32
    %9 = vector.broadcast %cst_1 : f32 to vector<16x16xf32>
    %10 = vector.broadcast %cst_2 : f32 to vector<16x16xf32>
    %11 = arith.select %8, %9, %10 : vector<16x16xi1>, vector<16x16xf32>
    %c1_i32_3 = arith.constant 1 : i32
    %12 = vector.broadcast %c1_i32_3 : i32 to vector<16x16xi32>
    %13 = arith.cmpi sge, %0, %12 : vector<16x16xi32>
    %cst_4 = arith.constant 0.000000e+00 : f32
    %cst_5 = arith.constant 0xFF800000 : f32
    %14 = vector.broadcast %cst_4 : f32 to vector<16x16xf32>
    %15 = vector.broadcast %cst_5 : f32 to vector<16x16xf32>
    %16 = arith.select %13, %14, %15 : vector<16x16xi1>, vector<16x16xf32>
    %c15_i32_6 = arith.constant 15 : i32
    %17 = vector.broadcast %c15_i32_6 : i32 to vector<16x16xi32>
    %18 = arith.cmpi slt, %0, %17 : vector<16x16xi32>
    %cst_7 = arith.constant 0.000000e+00 : f32
    %cst_8 = arith.constant 0xFF800000 : f32
    %19 = vector.broadcast %cst_7 : f32 to vector<16x16xf32>
    %20 = vector.broadcast %cst_8 : f32 to vector<16x16xf32>
    %21 = arith.select %18, %19, %20 : vector<16x16xi1>, vector<16x16xf32>
    %c2_i32 = arith.constant 2 : i32
    %22 = vector.broadcast %c2_i32 : i32 to vector<16x16xi32>
    %23 = arith.cmpi sge, %1, %22 : vector<16x16xi32>
    %cst_9 = arith.constant 0.000000e+00 : f32
    %cst_10 = arith.constant 0xFF800000 : f32
    %24 = vector.broadcast %cst_9 : f32 to vector<16x16xf32>
    %25 = vector.broadcast %cst_10 : f32 to vector<16x16xf32>
    %26 = arith.select %23, %24, %25 : vector<16x16xi1>, vector<16x16xf32>
    %c14_i32 = arith.constant 14 : i32
    %27 = vector.broadcast %c14_i32 : i32 to vector<16x16xi32>
    %28 = arith.cmpi slt, %1, %27 : vector<16x16xi32>
    %cst_11 = arith.constant 0.000000e+00 : f32
    %cst_12 = arith.constant 0xFF800000 : f32
    %29 = vector.broadcast %cst_11 : f32 to vector<16x16xf32>
    %30 = vector.broadcast %cst_12 : f32 to vector<16x16xf32>
    %31 = arith.select %28, %29, %30 : vector<16x16xi1>, vector<16x16xf32>
    %c2_i32_13 = arith.constant 2 : i32
    %32 = vector.broadcast %c2_i32_13 : i32 to vector<16x16xi32>
    %33 = arith.cmpi sge, %0, %32 : vector<16x16xi32>
    %cst_14 = arith.constant 0.000000e+00 : f32
    %cst_15 = arith.constant 0xFF800000 : f32
    %34 = vector.broadcast %cst_14 : f32 to vector<16x16xf32>
    %35 = vector.broadcast %cst_15 : f32 to vector<16x16xf32>
    %36 = arith.select %33, %34, %35 : vector<16x16xi1>, vector<16x16xf32>
    %c14_i32_16 = arith.constant 14 : i32
    %37 = vector.broadcast %c14_i32_16 : i32 to vector<16x16xi32>
    %38 = arith.cmpi slt, %0, %37 : vector<16x16xi32>
    %cst_17 = arith.constant 0.000000e+00 : f32
    %cst_18 = arith.constant 0xFF800000 : f32
    %39 = vector.broadcast %cst_17 : f32 to vector<16x16xf32>
    %40 = vector.broadcast %cst_18 : f32 to vector<16x16xf32>
    %41 = arith.select %38, %39, %40 : vector<16x16xi1>, vector<16x16xf32>
    %c0 = arith.constant 0 : index
    %c0_19 = arith.constant 0 : index
    %c0_20 = arith.constant 0 : index
    %42 = vector.load %arg1[%c0, %c0_19, %c0_20] : memref<4x16x16xf32, #tpu.memory_space<vmem>>, vector<1x16x16xf32>
    %43 = vector.shape_cast %42 : vector<1x16x16xf32> to vector<16x16xf32>
    %c0_21 = arith.constant 0 : index
    %c0_22 = arith.constant 0 : index
    %c0_23 = arith.constant 0 : index
    %44 = vector.load %arg2[%c0_21, %c0_22, %c0_23] : memref<4x16x16xf32, #tpu.memory_space<vmem>>, vector<1x16x16xf32>
    %45 = vector.shape_cast %44 : vector<1x16x16xf32> to vector<16x16xf32>
    %46 = arith.mulf %43, %45 : vector<16x16xf32>
    %47 = vector.shape_cast %46 : vector<16x16xf32> to vector<1x16x16xf32>
    %cst_24 = arith.constant dense<0.000000e+00> : vector<1xf32>
    %48 = vector.multi_reduction <add>, %47, %cst_24 [1, 2] : vector<1x16x16xf32> to vector<1xf32>
    %49 = vector.shape_cast %48 : vector<1xf32> to vector<1x1x1xf32>
    %50 = vector.extract %49[0, 0, 0] : f32 from vector<1x1x1xf32>
    %51 = vector.broadcast %50 : f32 to vector<1x1xf32>
    %52 = arith.addf %43, %45 : vector<16x16xf32>
    %53 = vector.shape_cast %52 : vector<16x16xf32> to vector<1x16x16xf32>
    %cst_25 = arith.constant dense<0.000000e+00> : vector<1xf32>
    %54 = vector.multi_reduction <add>, %53, %cst_25 [1, 2] : vector<1x16x16xf32> to vector<1xf32>
    %55 = vector.shape_cast %54 : vector<1xf32> to vector<1x1x1xf32>
    %56 = vector.extract %55[0, 0, 0] : f32 from vector<1x1x1xf32>
    %57 = vector.broadcast %56 : f32 to vector<1x1xf32>
    %cst_26 = arith.constant 1.000000e+00 : f32
    %58 = vector.broadcast %cst_26 : f32 to vector<16x16xf32>
    %59 = arith.subf %58, %43 : vector<16x16xf32>
    %cst_27 = arith.constant 1.000000e+00 : f32
    %60 = vector.broadcast %cst_27 : f32 to vector<16x16xf32>
    %61 = arith.subf %60, %45 : vector<16x16xf32>
    %c15_i32_28 = arith.constant 15 : i32
    %62 = tpu.dynamic_rotate %59 by %c15_i32_28 dim 1 : vector<16x16xf32>, i32 -> vector<16x16xf32>
    %63 = arith.addf %62, %11 : vector<16x16xf32>
    %64 = arith.maximumf %59, %63 : vector<16x16xf32>
    %c1_i32_29 = arith.constant 1 : i32
    %65 = tpu.dynamic_rotate %59 by %c1_i32_29 dim 1 : vector<16x16xf32>, i32 -> vector<16x16xf32>
    %66 = arith.addf %65, %6 : vector<16x16xf32>
    %67 = arith.maximumf %64, %66 : vector<16x16xf32>
    %c15_i32_30 = arith.constant 15 : i32
    %68 = tpu.dynamic_rotate %67 by %c15_i32_30 dim 0 : vector<16x16xf32>, i32 -> vector<16x16xf32>
    %69 = arith.addf %68, %21 : vector<16x16xf32>
    %70 = arith.maximumf %67, %69 : vector<16x16xf32>
    %c1_i32_31 = arith.constant 1 : i32
    %71 = tpu.dynamic_rotate %67 by %c1_i32_31 dim 0 : vector<16x16xf32>, i32 -> vector<16x16xf32>
    %72 = arith.addf %71, %16 : vector<16x16xf32>
    %73 = arith.maximumf %70, %72 : vector<16x16xf32>
    %74 = arith.subf %73, %59 : vector<16x16xf32>
    %c15_i32_32 = arith.constant 15 : i32
    %75 = tpu.dynamic_rotate %61 by %c15_i32_32 dim 1 : vector<16x16xf32>, i32 -> vector<16x16xf32>
    %76 = arith.addf %75, %11 : vector<16x16xf32>
    %77 = arith.maximumf %61, %76 : vector<16x16xf32>
    %c1_i32_33 = arith.constant 1 : i32
    %78 = tpu.dynamic_rotate %61 by %c1_i32_33 dim 1 : vector<16x16xf32>, i32 -> vector<16x16xf32>
    %79 = arith.addf %78, %6 : vector<16x16xf32>
    %80 = arith.maximumf %77, %79 : vector<16x16xf32>
    %c15_i32_34 = arith.constant 15 : i32
    %81 = tpu.dynamic_rotate %80 by %c15_i32_34 dim 0 : vector<16x16xf32>, i32 -> vector<16x16xf32>
    %82 = arith.addf %81, %21 : vector<16x16xf32>
    %83 = arith.maximumf %80, %82 : vector<16x16xf32>
    %c1_i32_35 = arith.constant 1 : i32
    %84 = tpu.dynamic_rotate %80 by %c1_i32_35 dim 0 : vector<16x16xf32>, i32 -> vector<16x16xf32>
    %85 = arith.addf %84, %16 : vector<16x16xf32>
    %86 = arith.maximumf %83, %85 : vector<16x16xf32>
    %87 = arith.subf %86, %61 : vector<16x16xf32>
    %c14_i32_36 = arith.constant 14 : i32
    %88 = tpu.dynamic_rotate %74 by %c14_i32_36 dim 1 : vector<16x16xf32>, i32 -> vector<16x16xf32>
    %89 = arith.addf %88, %31 : vector<16x16xf32>
    %90 = arith.maximumf %74, %89 : vector<16x16xf32>
    %c15_i32_37 = arith.constant 15 : i32
    %91 = tpu.dynamic_rotate %74 by %c15_i32_37 dim 1 : vector<16x16xf32>, i32 -> vector<16x16xf32>
    %92 = arith.addf %91, %11 : vector<16x16xf32>
    %93 = arith.maximumf %90, %92 : vector<16x16xf32>
    %c1_i32_38 = arith.constant 1 : i32
    %94 = tpu.dynamic_rotate %74 by %c1_i32_38 dim 1 : vector<16x16xf32>, i32 -> vector<16x16xf32>
    %95 = arith.addf %94, %6 : vector<16x16xf32>
    %96 = arith.maximumf %93, %95 : vector<16x16xf32>
    %c2_i32_39 = arith.constant 2 : i32
    %97 = tpu.dynamic_rotate %74 by %c2_i32_39 dim 1 : vector<16x16xf32>, i32 -> vector<16x16xf32>
    %98 = arith.addf %97, %26 : vector<16x16xf32>
    %99 = arith.maximumf %96, %98 : vector<16x16xf32>
    %c14_i32_40 = arith.constant 14 : i32
    %100 = tpu.dynamic_rotate %99 by %c14_i32_40 dim 0 : vector<16x16xf32>, i32 -> vector<16x16xf32>
    %101 = arith.addf %100, %41 : vector<16x16xf32>
    %102 = arith.maximumf %99, %101 : vector<16x16xf32>
    %c15_i32_41 = arith.constant 15 : i32
    %103 = tpu.dynamic_rotate %99 by %c15_i32_41 dim 0 : vector<16x16xf32>, i32 -> vector<16x16xf32>
    %104 = arith.addf %103, %21 : vector<16x16xf32>
    %105 = arith.maximumf %102, %104 : vector<16x16xf32>
    %c1_i32_42 = arith.constant 1 : i32
    %106 = tpu.dynamic_rotate %99 by %c1_i32_42 dim 0 : vector<16x16xf32>, i32 -> vector<16x16xf32>
    %107 = arith.addf %106, %16 : vector<16x16xf32>
    %108 = arith.maximumf %105, %107 : vector<16x16xf32>
    %c2_i32_43 = arith.constant 2 : i32
    %109 = tpu.dynamic_rotate %99 by %c2_i32_43 dim 0 : vector<16x16xf32>, i32 -> vector<16x16xf32>
    %110 = arith.addf %109, %36 : vector<16x16xf32>
    %111 = arith.maximumf %108, %110 : vector<16x16xf32>
    %c14_i32_44 = arith.constant 14 : i32
    %112 = tpu.dynamic_rotate %87 by %c14_i32_44 dim 1 : vector<16x16xf32>, i32 -> vector<16x16xf32>
    %113 = arith.addf %112, %31 : vector<16x16xf32>
    %114 = arith.maximumf %87, %113 : vector<16x16xf32>
    %c15_i32_45 = arith.constant 15 : i32
    %115 = tpu.dynamic_rotate %87 by %c15_i32_45 dim 1 : vector<16x16xf32>, i32 -> vector<16x16xf32>
    %116 = arith.addf %115, %11 : vector<16x16xf32>
    %117 = arith.maximumf %114, %116 : vector<16x16xf32>
    %c1_i32_46 = arith.constant 1 : i32
    %118 = tpu.dynamic_rotate %87 by %c1_i32_46 dim 1 : vector<16x16xf32>, i32 -> vector<16x16xf32>
    %119 = arith.addf %118, %6 : vector<16x16xf32>
    %120 = arith.maximumf %117, %119 : vector<16x16xf32>
    %c2_i32_47 = arith.constant 2 : i32
    %121 = tpu.dynamic_rotate %87 by %c2_i32_47 dim 1 : vector<16x16xf32>, i32 -> vector<16x16xf32>
    %122 = arith.addf %121, %26 : vector<16x16xf32>
    %123 = arith.maximumf %120, %122 : vector<16x16xf32>
    %c14_i32_48 = arith.constant 14 : i32
    %124 = tpu.dynamic_rotate %123 by %c14_i32_48 dim 0 : vector<16x16xf32>, i32 -> vector<16x16xf32>
    %125 = arith.addf %124, %41 : vector<16x16xf32>
    %126 = arith.maximumf %123, %125 : vector<16x16xf32>
    %c15_i32_49 = arith.constant 15 : i32
    %127 = tpu.dynamic_rotate %123 by %c15_i32_49 dim 0 : vector<16x16xf32>, i32 -> vector<16x16xf32>
    %128 = arith.addf %127, %21 : vector<16x16xf32>
    %129 = arith.maximumf %126, %128 : vector<16x16xf32>
    %c1_i32_50 = arith.constant 1 : i32
    %130 = tpu.dynamic_rotate %123 by %c1_i32_50 dim 0 : vector<16x16xf32>, i32 -> vector<16x16xf32>
    %131 = arith.addf %130, %16 : vector<16x16xf32>
    %132 = arith.maximumf %129, %131 : vector<16x16xf32>
    %c2_i32_51 = arith.constant 2 : i32
    %133 = tpu.dynamic_rotate %123 by %c2_i32_51 dim 0 : vector<16x16xf32>, i32 -> vector<16x16xf32>
    %134 = arith.addf %133, %36 : vector<16x16xf32>
    %135 = arith.maximumf %132, %134 : vector<16x16xf32>
    %136 = arith.mulf %74, %135 : vector<16x16xf32>
    %137 = vector.shape_cast %136 : vector<16x16xf32> to vector<1x16x16xf32>
    %cst_52 = arith.constant dense<0.000000e+00> : vector<1xf32>
    %138 = vector.multi_reduction <add>, %137, %cst_52 [1, 2] : vector<1x16x16xf32> to vector<1xf32>
    %139 = vector.shape_cast %138 : vector<1xf32> to vector<1x1x1xf32>
    %140 = vector.extract %139[0, 0, 0] : f32 from vector<1x1x1xf32>
    %141 = vector.broadcast %140 : f32 to vector<1x1xf32>
    %142 = vector.shape_cast %74 : vector<16x16xf32> to vector<1x16x16xf32>
    %cst_53 = arith.constant dense<0.000000e+00> : vector<1xf32>
    %143 = vector.multi_reduction <add>, %142, %cst_53 [1, 2] : vector<1x16x16xf32> to vector<1xf32>
    %144 = vector.shape_cast %143 : vector<1xf32> to vector<1x1x1xf32>
    %145 = vector.extract %144[0, 0, 0] : f32 from vector<1x1x1xf32>
    %146 = vector.broadcast %145 : f32 to vector<1x1xf32>
    %cst_54 = arith.constant 1.000000e-07 : f32
    %147 = vector.broadcast %cst_54 : f32 to vector<1x1xf32>
    %148 = arith.addf %146, %147 : vector<1x1xf32>
    %149 = arith.divf %141, %148 : vector<1x1xf32>
    %150 = arith.mulf %111, %87 : vector<16x16xf32>
    %151 = vector.shape_cast %150 : vector<16x16xf32> to vector<1x16x16xf32>
    %cst_55 = arith.constant dense<0.000000e+00> : vector<1xf32>
    %152 = vector.multi_reduction <add>, %151, %cst_55 [1, 2] : vector<1x16x16xf32> to vector<1xf32>
    %153 = vector.shape_cast %152 : vector<1xf32> to vector<1x1x1xf32>
    %154 = vector.extract %153[0, 0, 0] : f32 from vector<1x1x1xf32>
    %155 = vector.broadcast %154 : f32 to vector<1x1xf32>
    %156 = vector.shape_cast %87 : vector<16x16xf32> to vector<1x16x16xf32>
    %cst_56 = arith.constant dense<0.000000e+00> : vector<1xf32>
    %157 = vector.multi_reduction <add>, %156, %cst_56 [1, 2] : vector<1x16x16xf32> to vector<1xf32>
    %158 = vector.shape_cast %157 : vector<1xf32> to vector<1x1x1xf32>
    %159 = vector.extract %158[0, 0, 0] : f32 from vector<1x1x1xf32>
    %160 = vector.broadcast %159 : f32 to vector<1x1xf32>
    %cst_57 = arith.constant 1.000000e-07 : f32
    %161 = vector.broadcast %cst_57 : f32 to vector<1x1xf32>
    %162 = arith.addf %160, %161 : vector<1x1xf32>
    %163 = arith.divf %155, %162 : vector<1x1xf32>
    %cst_58 = arith.constant 2.000000e+00 : f32
    %164 = vector.broadcast %cst_58 : f32 to vector<1x1xf32>
    %165 = arith.mulf %164, %149 : vector<1x1xf32>
    %166 = arith.mulf %165, %163 : vector<1x1xf32>
    %167 = arith.addf %149, %163 : vector<1x1xf32>
    %cst_59 = arith.constant 1.000000e-07 : f32
    %168 = vector.broadcast %cst_59 : f32 to vector<1x1xf32>
    %169 = arith.addf %167, %168 : vector<1x1xf32>
    %170 = arith.divf %166, %169 : vector<1x1xf32>
    %c0_60 = arith.constant 0 : index
    %c0_61 = arith.constant 0 : index
    %c0_62 = arith.constant 0 : index
    %171 = vector.load %arg3[%c0_60, %c0_61, %c0_62] : memref<1x4x3xf32, #tpu.memory_space<vmem>>, vector<1x1x1xf32>
    %172 = vector.shape_cast %171 : vector<1x1x1xf32> to vector<1x1xf32>
    %173 = vector.shape_cast %51 : vector<1x1xf32> to vector<1x1x1xf32>
    tpu.vector_store %arg3[%c0_60, %c0_61, %c0_62], %173 {strides = array<i32>} : memref<1x4x3xf32, #tpu.memory_space<vmem>>, vector<1x1x1xf32>,
    %c0_63 = arith.constant 0 : index
    %c0_64 = arith.constant 0 : index
    %c1 = arith.constant 1 : index
    %174 = vector.load %arg3[%c0_63, %c0_64, %c1] : memref<1x4x3xf32, #tpu.memory_space<vmem>>, vector<1x1x1xf32>
    %175 = vector.shape_cast %174 : vector<1x1x1xf32> to vector<1x1xf32>
    %176 = vector.shape_cast %57 : vector<1x1xf32> to vector<1x1x1xf32>
    tpu.vector_store %arg3[%c0_63, %c0_64, %c1], %176 {strides = array<i32>} : memref<1x4x3xf32, #tpu.memory_space<vmem>>, vector<1x1x1xf32>,
    %cst_65 = arith.constant 1.000000e+00 : f32
    %177 = vector.broadcast %cst_65 : f32 to vector<1x1xf32>
    %178 = arith.subf %177, %170 : vector<1x1xf32>
    %c0_66 = arith.constant 0 : index
    %c0_67 = arith.constant 0 : index
    %c2 = arith.constant 2 : index
    %179 = vector.load %arg3[%c0_66, %c0_67, %c2] : memref<1x4x3xf32, #tpu.memory_space<vmem>>, vector<1x1x1xf32>
    %180 = vector.shape_cast %179 : vector<1x1x1xf32> to vector<1x1xf32>
    %181 = vector.shape_cast %178 : vector<1x1xf32> to vector<1x1x1xf32>
    tpu.vector_store %arg3[%c0_66, %c0_67, %c2], %181 {strides = array<i32>} : memref<1x4x3xf32, #tpu.memory_space<vmem>>, vector<1x1x1xf32>,
    %c1_68 = arith.constant 1 : index
    %c0_69 = arith.constant 0 : index
    %c0_70 = arith.constant 0 : index
    %182 = vector.load %arg1[%c1_68, %c0_69, %c0_70] : memref<4x16x16xf32, #tpu.memory_space<vmem>>, vector<1x16x16xf32>
    %183 = vector.shape_cast %182 : vector<1x16x16xf32> to vector<16x16xf32>
    %c1_71 = arith.constant 1 : index
    %c0_72 = arith.constant 0 : index
    %c0_73 = arith.constant 0 : index
    %184 = vector.load %arg2[%c1_71, %c0_72, %c0_73] : memref<4x16x16xf32, #tpu.memory_space<vmem>>, vector<1x16x16xf32>
    %185 = vector.shape_cast %184 : vector<1x16x16xf32> to vector<16x16xf32>
    %186 = arith.mulf %183, %185 : vector<16x16xf32>
    %187 = vector.shape_cast %186 : vector<16x16xf32> to vector<1x16x16xf32>
    %cst_74 = arith.constant dense<0.000000e+00> : vector<1xf32>
    %188 = vector.multi_reduction <add>, %187, %cst_74 [1, 2] : vector<1x16x16xf32> to vector<1xf32>
    %189 = vector.shape_cast %188 : vector<1xf32> to vector<1x1x1xf32>
    %190 = vector.extract %189[0, 0, 0] : f32 from vector<1x1x1xf32>
    %191 = vector.broadcast %190 : f32 to vector<1x1xf32>
    %192 = arith.addf %183, %185 : vector<16x16xf32>
    %193 = vector.shape_cast %192 : vector<16x16xf32> to vector<1x16x16xf32>
    %cst_75 = arith.constant dense<0.000000e+00> : vector<1xf32>
    %194 = vector.multi_reduction <add>, %193, %cst_75 [1, 2] : vector<1x16x16xf32> to vector<1xf32>
    %195 = vector.shape_cast %194 : vector<1xf32> to vector<1x1x1xf32>
    %196 = vector.extract %195[0, 0, 0] : f32 from vector<1x1x1xf32>
    %197 = vector.broadcast %196 : f32 to vector<1x1xf32>
    %cst_76 = arith.constant 1.000000e+00 : f32
    %198 = vector.broadcast %cst_76 : f32 to vector<16x16xf32>
    %199 = arith.subf %198, %183 : vector<16x16xf32>
    %cst_77 = arith.constant 1.000000e+00 : f32
    %200 = vector.broadcast %cst_77 : f32 to vector<16x16xf32>
    %201 = arith.subf %200, %185 : vector<16x16xf32>
    %c15_i32_78 = arith.constant 15 : i32
    %202 = tpu.dynamic_rotate %199 by %c15_i32_78 dim 1 : vector<16x16xf32>, i32 -> vector<16x16xf32>
    %203 = arith.addf %202, %11 : vector<16x16xf32>
    %204 = arith.maximumf %199, %203 : vector<16x16xf32>
    %c1_i32_79 = arith.constant 1 : i32
    %205 = tpu.dynamic_rotate %199 by %c1_i32_79 dim 1 : vector<16x16xf32>, i32 -> vector<16x16xf32>
    %206 = arith.addf %205, %6 : vector<16x16xf32>
    %207 = arith.maximumf %204, %206 : vector<16x16xf32>
    %c15_i32_80 = arith.constant 15 : i32
    %208 = tpu.dynamic_rotate %207 by %c15_i32_80 dim 0 : vector<16x16xf32>, i32 -> vector<16x16xf32>
    %209 = arith.addf %208, %21 : vector<16x16xf32>
    %210 = arith.maximumf %207, %209 : vector<16x16xf32>
    %c1_i32_81 = arith.constant 1 : i32
    %211 = tpu.dynamic_rotate %207 by %c1_i32_81 dim 0 : vector<16x16xf32>, i32 -> vector<16x16xf32>
    %212 = arith.addf %211, %16 : vector<16x16xf32>
    %213 = arith.maximumf %210, %212 : vector<16x16xf32>
    %214 = arith.subf %213, %199 : vector<16x16xf32>
    %c15_i32_82 = arith.constant 15 : i32
    %215 = tpu.dynamic_rotate %201 by %c15_i32_82 dim 1 : vector<16x16xf32>, i32 -> vector<16x16xf32>
    %216 = arith.addf %215, %11 : vector<16x16xf32>
    %217 = arith.maximumf %201, %216 : vector<16x16xf32>
    %c1_i32_83 = arith.constant 1 : i32
    %218 = tpu.dynamic_rotate %201 by %c1_i32_83 dim 1 : vector<16x16xf32>, i32 -> vector<16x16xf32>
    %219 = arith.addf %218, %6 : vector<16x16xf32>
    %220 = arith.maximumf %217, %219 : vector<16x16xf32>
    %c15_i32_84 = arith.constant 15 : i32
    %221 = tpu.dynamic_rotate %220 by %c15_i32_84 dim 0 : vector<16x16xf32>, i32 -> vector<16x16xf32>
    %222 = arith.addf %221, %21 : vector<16x16xf32>
    %223 = arith.maximumf %220, %222 : vector<16x16xf32>
    %c1_i32_85 = arith.constant 1 : i32
    %224 = tpu.dynamic_rotate %220 by %c1_i32_85 dim 0 : vector<16x16xf32>, i32 -> vector<16x16xf32>
    %225 = arith.addf %224, %16 : vector<16x16xf32>
    %226 = arith.maximumf %223, %225 : vector<16x16xf32>
    %227 = arith.subf %226, %201 : vector<16x16xf32>
    %c14_i32_86 = arith.constant 14 : i32
    %228 = tpu.dynamic_rotate %214 by %c14_i32_86 dim 1 : vector<16x16xf32>, i32 -> vector<16x16xf32>
    %229 = arith.addf %228, %31 : vector<16x16xf32>
    %230 = arith.maximumf %214, %229 : vector<16x16xf32>
    %c15_i32_87 = arith.constant 15 : i32
    %231 = tpu.dynamic_rotate %214 by %c15_i32_87 dim 1 : vector<16x16xf32>, i32 -> vector<16x16xf32>
    %232 = arith.addf %231, %11 : vector<16x16xf32>
    %233 = arith.maximumf %230, %232 : vector<16x16xf32>
    %c1_i32_88 = arith.constant 1 : i32
    %234 = tpu.dynamic_rotate %214 by %c1_i32_88 dim 1 : vector<16x16xf32>, i32 -> vector<16x16xf32>
    %235 = arith.addf %234, %6 : vector<16x16xf32>
    %236 = arith.maximumf %233, %235 : vector<16x16xf32>
    %c2_i32_89 = arith.constant 2 : i32
    %237 = tpu.dynamic_rotate %214 by %c2_i32_89 dim 1 : vector<16x16xf32>, i32 -> vector<16x16xf32>
    %238 = arith.addf %237, %26 : vector<16x16xf32>
    %239 = arith.maximumf %236, %238 : vector<16x16xf32>
    %c14_i32_90 = arith.constant 14 : i32
    %240 = tpu.dynamic_rotate %239 by %c14_i32_90 dim 0 : vector<16x16xf32>, i32 -> vector<16x16xf32>
    %241 = arith.addf %240, %41 : vector<16x16xf32>
    %242 = arith.maximumf %239, %241 : vector<16x16xf32>
    %c15_i32_91 = arith.constant 15 : i32
    %243 = tpu.dynamic_rotate %239 by %c15_i32_91 dim 0 : vector<16x16xf32>, i32 -> vector<16x16xf32>
    %244 = arith.addf %243, %21 : vector<16x16xf32>
    %245 = arith.maximumf %242, %244 : vector<16x16xf32>
    %c1_i32_92 = arith.constant 1 : i32
    %246 = tpu.dynamic_rotate %239 by %c1_i32_92 dim 0 : vector<16x16xf32>, i32 -> vector<16x16xf32>
    %247 = arith.addf %246, %16 : vector<16x16xf32>
    %248 = arith.maximumf %245, %247 : vector<16x16xf32>
    %c2_i32_93 = arith.constant 2 : i32
    %249 = tpu.dynamic_rotate %239 by %c2_i32_93 dim 0 : vector<16x16xf32>, i32 -> vector<16x16xf32>
    %250 = arith.addf %249, %36 : vector<16x16xf32>
    %251 = arith.maximumf %248, %250 : vector<16x16xf32>
    %c14_i32_94 = arith.constant 14 : i32
    %252 = tpu.dynamic_rotate %227 by %c14_i32_94 dim 1 : vector<16x16xf32>, i32 -> vector<16x16xf32>
    %253 = arith.addf %252, %31 : vector<16x16xf32>
    %254 = arith.maximumf %227, %253 : vector<16x16xf32>
    %c15_i32_95 = arith.constant 15 : i32
    %255 = tpu.dynamic_rotate %227 by %c15_i32_95 dim 1 : vector<16x16xf32>, i32 -> vector<16x16xf32>
    %256 = arith.addf %255, %11 : vector<16x16xf32>
    %257 = arith.maximumf %254, %256 : vector<16x16xf32>
    %c1_i32_96 = arith.constant 1 : i32
    %258 = tpu.dynamic_rotate %227 by %c1_i32_96 dim 1 : vector<16x16xf32>, i32 -> vector<16x16xf32>
    %259 = arith.addf %258, %6 : vector<16x16xf32>
    %260 = arith.maximumf %257, %259 : vector<16x16xf32>
    %c2_i32_97 = arith.constant 2 : i32
    %261 = tpu.dynamic_rotate %227 by %c2_i32_97 dim 1 : vector<16x16xf32>, i32 -> vector<16x16xf32>
    %262 = arith.addf %261, %26 : vector<16x16xf32>
    %263 = arith.maximumf %260, %262 : vector<16x16xf32>
    %c14_i32_98 = arith.constant 14 : i32
    %264 = tpu.dynamic_rotate %263 by %c14_i32_98 dim 0 : vector<16x16xf32>, i32 -> vector<16x16xf32>
    %265 = arith.addf %264, %41 : vector<16x16xf32>
    %266 = arith.maximumf %263, %265 : vector<16x16xf32>
    %c15_i32_99 = arith.constant 15 : i32
    %267 = tpu.dynamic_rotate %263 by %c15_i32_99 dim 0 : vector<16x16xf32>, i32 -> vector<16x16xf32>
    %268 = arith.addf %267, %21 : vector<16x16xf32>
    %269 = arith.maximumf %266, %268 : vector<16x16xf32>
    %c1_i32_100 = arith.constant 1 : i32
    %270 = tpu.dynamic_rotate %263 by %c1_i32_100 dim 0 : vector<16x16xf32>, i32 -> vector<16x16xf32>
    %271 = arith.addf %270, %16 : vector<16x16xf32>
    %272 = arith.maximumf %269, %271 : vector<16x16xf32>
    %c2_i32_101 = arith.constant 2 : i32
    %273 = tpu.dynamic_rotate %263 by %c2_i32_101 dim 0 : vector<16x16xf32>, i32 -> vector<16x16xf32>
    %274 = arith.addf %273, %36 : vector<16x16xf32>
    %275 = arith.maximumf %272, %274 : vector<16x16xf32>
    %276 = arith.mulf %214, %275 : vector<16x16xf32>
    %277 = vector.shape_cast %276 : vector<16x16xf32> to vector<1x16x16xf32>
    %cst_102 = arith.constant dense<0.000000e+00> : vector<1xf32>
    %278 = vector.multi_reduction <add>, %277, %cst_102 [1, 2] : vector<1x16x16xf32> to vector<1xf32>
    %279 = vector.shape_cast %278 : vector<1xf32> to vector<1x1x1xf32>
    %280 = vector.extract %279[0, 0, 0] : f32 from vector<1x1x1xf32>
    %281 = vector.broadcast %280 : f32 to vector<1x1xf32>
    %282 = vector.shape_cast %214 : vector<16x16xf32> to vector<1x16x16xf32>
    %cst_103 = arith.constant dense<0.000000e+00> : vector<1xf32>
    %283 = vector.multi_reduction <add>, %282, %cst_103 [1, 2] : vector<1x16x16xf32> to vector<1xf32>
    %284 = vector.shape_cast %283 : vector<1xf32> to vector<1x1x1xf32>
    %285 = vector.extract %284[0, 0, 0] : f32 from vector<1x1x1xf32>
    %286 = vector.broadcast %285 : f32 to vector<1x1xf32>
    %cst_104 = arith.constant 1.000000e-07 : f32
    %287 = vector.broadcast %cst_104 : f32 to vector<1x1xf32>
    %288 = arith.addf %286, %287 : vector<1x1xf32>
    %289 = arith.divf %281, %288 : vector<1x1xf32>
    %290 = arith.mulf %251, %227 : vector<16x16xf32>
    %291 = vector.shape_cast %290 : vector<16x16xf32> to vector<1x16x16xf32>
    %cst_105 = arith.constant dense<0.000000e+00> : vector<1xf32>
    %292 = vector.multi_reduction <add>, %291, %cst_105 [1, 2] : vector<1x16x16xf32> to vector<1xf32>
    %293 = vector.shape_cast %292 : vector<1xf32> to vector<1x1x1xf32>
    %294 = vector.extract %293[0, 0, 0] : f32 from vector<1x1x1xf32>
    %295 = vector.broadcast %294 : f32 to vector<1x1xf32>
    %296 = vector.shape_cast %227 : vector<16x16xf32> to vector<1x16x16xf32>
    %cst_106 = arith.constant dense<0.000000e+00> : vector<1xf32>
    %297 = vector.multi_reduction <add>, %296, %cst_106 [1, 2] : vector<1x16x16xf32> to vector<1xf32>
    %298 = vector.shape_cast %297 : vector<1xf32> to vector<1x1x1xf32>
    %299 = vector.extract %298[0, 0, 0] : f32 from vector<1x1x1xf32>
    %300 = vector.broadcast %299 : f32 to vector<1x1xf32>
    %cst_107 = arith.constant 1.000000e-07 : f32
    %301 = vector.broadcast %cst_107 : f32 to vector<1x1xf32>
    %302 = arith.addf %300, %301 : vector<1x1xf32>
    %303 = arith.divf %295, %302 : vector<1x1xf32>
    %cst_108 = arith.constant 2.000000e+00 : f32
    %304 = vector.broadcast %cst_108 : f32 to vector<1x1xf32>
    %305 = arith.mulf %304, %289 : vector<1x1xf32>
    %306 = arith.mulf %305, %303 : vector<1x1xf32>
    %307 = arith.addf %289, %303 : vector<1x1xf32>
    %cst_109 = arith.constant 1.000000e-07 : f32
    %308 = vector.broadcast %cst_109 : f32 to vector<1x1xf32>
    %309 = arith.addf %307, %308 : vector<1x1xf32>
    %310 = arith.divf %306, %309 : vector<1x1xf32>
    %c0_110 = arith.constant 0 : index
    %c1_111 = arith.constant 1 : index
    %c0_112 = arith.constant 0 : index
    %311 = vector.load %arg3[%c0_110, %c1_111, %c0_112] : memref<1x4x3xf32, #tpu.memory_space<vmem>>, vector<1x1x1xf32>
    %312 = vector.shape_cast %311 : vector<1x1x1xf32> to vector<1x1xf32>
    %313 = vector.shape_cast %191 : vector<1x1xf32> to vector<1x1x1xf32>
    tpu.vector_store %arg3[%c0_110, %c1_111, %c0_112], %313 {strides = array<i32>} : memref<1x4x3xf32, #tpu.memory_space<vmem>>, vector<1x1x1xf32>,
    %c0_113 = arith.constant 0 : index
    %c1_114 = arith.constant 1 : index
    %c1_115 = arith.constant 1 : index
    %314 = vector.load %arg3[%c0_113, %c1_114, %c1_115] : memref<1x4x3xf32, #tpu.memory_space<vmem>>, vector<1x1x1xf32>
    %315 = vector.shape_cast %314 : vector<1x1x1xf32> to vector<1x1xf32>
    %316 = vector.shape_cast %197 : vector<1x1xf32> to vector<1x1x1xf32>
    tpu.vector_store %arg3[%c0_113, %c1_114, %c1_115], %316 {strides = array<i32>} : memref<1x4x3xf32, #tpu.memory_space<vmem>>, vector<1x1x1xf32>,
    %cst_116 = arith.constant 1.000000e+00 : f32
    %317 = vector.broadcast %cst_116 : f32 to vector<1x1xf32>
    %318 = arith.subf %317, %310 : vector<1x1xf32>
    %c0_117 = arith.constant 0 : index
    %c1_118 = arith.constant 1 : index
    %c2_119 = arith.constant 2 : index
    %319 = vector.load %arg3[%c0_117, %c1_118, %c2_119] : memref<1x4x3xf32, #tpu.memory_space<vmem>>, vector<1x1x1xf32>
    %320 = vector.shape_cast %319 : vector<1x1x1xf32> to vector<1x1xf32>
    %321 = vector.shape_cast %318 : vector<1x1xf32> to vector<1x1x1xf32>
    tpu.vector_store %arg3[%c0_117, %c1_118, %c2_119], %321 {strides = array<i32>} : memref<1x4x3xf32, #tpu.memory_space<vmem>>, vector<1x1x1xf32>,
    %c2_120 = arith.constant 2 : index
    %c0_121 = arith.constant 0 : index
    %c0_122 = arith.constant 0 : index
    %322 = vector.load %arg1[%c2_120, %c0_121, %c0_122] : memref<4x16x16xf32, #tpu.memory_space<vmem>>, vector<1x16x16xf32>
    %323 = vector.shape_cast %322 : vector<1x16x16xf32> to vector<16x16xf32>
    %c2_123 = arith.constant 2 : index
    %c0_124 = arith.constant 0 : index
    %c0_125 = arith.constant 0 : index
    %324 = vector.load %arg2[%c2_123, %c0_124, %c0_125] : memref<4x16x16xf32, #tpu.memory_space<vmem>>, vector<1x16x16xf32>
    %325 = vector.shape_cast %324 : vector<1x16x16xf32> to vector<16x16xf32>
    %326 = arith.mulf %323, %325 : vector<16x16xf32>
    %327 = vector.shape_cast %326 : vector<16x16xf32> to vector<1x16x16xf32>
    %cst_126 = arith.constant dense<0.000000e+00> : vector<1xf32>
    %328 = vector.multi_reduction <add>, %327, %cst_126 [1, 2] : vector<1x16x16xf32> to vector<1xf32>
    %329 = vector.shape_cast %328 : vector<1xf32> to vector<1x1x1xf32>
    %330 = vector.extract %329[0, 0, 0] : f32 from vector<1x1x1xf32>
    %331 = vector.broadcast %330 : f32 to vector<1x1xf32>
    %332 = arith.addf %323, %325 : vector<16x16xf32>
    %333 = vector.shape_cast %332 : vector<16x16xf32> to vector<1x16x16xf32>
    %cst_127 = arith.constant dense<0.000000e+00> : vector<1xf32>
    %334 = vector.multi_reduction <add>, %333, %cst_127 [1, 2] : vector<1x16x16xf32> to vector<1xf32>
    %335 = vector.shape_cast %334 : vector<1xf32> to vector<1x1x1xf32>
    %336 = vector.extract %335[0, 0, 0] : f32 from vector<1x1x1xf32>
    %337 = vector.broadcast %336 : f32 to vector<1x1xf32>
    %cst_128 = arith.constant 1.000000e+00 : f32
    %338 = vector.broadcast %cst_128 : f32 to vector<16x16xf32>
    %339 = arith.subf %338, %323 : vector<16x16xf32>
    %cst_129 = arith.constant 1.000000e+00 : f32
    %340 = vector.broadcast %cst_129 : f32 to vector<16x16xf32>
    %341 = arith.subf %340, %325 : vector<16x16xf32>
    %c15_i32_130 = arith.constant 15 : i32
    %342 = tpu.dynamic_rotate %339 by %c15_i32_130 dim 1 : vector<16x16xf32>, i32 -> vector<16x16xf32>
    %343 = arith.addf %342, %11 : vector<16x16xf32>
    %344 = arith.maximumf %339, %343 : vector<16x16xf32>
    %c1_i32_131 = arith.constant 1 : i32
    %345 = tpu.dynamic_rotate %339 by %c1_i32_131 dim 1 : vector<16x16xf32>, i32 -> vector<16x16xf32>
    %346 = arith.addf %345, %6 : vector<16x16xf32>
    %347 = arith.maximumf %344, %346 : vector<16x16xf32>
    %c15_i32_132 = arith.constant 15 : i32
    %348 = tpu.dynamic_rotate %347 by %c15_i32_132 dim 0 : vector<16x16xf32>, i32 -> vector<16x16xf32>
    %349 = arith.addf %348, %21 : vector<16x16xf32>
    %350 = arith.maximumf %347, %349 : vector<16x16xf32>
    %c1_i32_133 = arith.constant 1 : i32
    %351 = tpu.dynamic_rotate %347 by %c1_i32_133 dim 0 : vector<16x16xf32>, i32 -> vector<16x16xf32>
    %352 = arith.addf %351, %16 : vector<16x16xf32>
    %353 = arith.maximumf %350, %352 : vector<16x16xf32>
    %354 = arith.subf %353, %339 : vector<16x16xf32>
    %c15_i32_134 = arith.constant 15 : i32
    %355 = tpu.dynamic_rotate %341 by %c15_i32_134 dim 1 : vector<16x16xf32>, i32 -> vector<16x16xf32>
    %356 = arith.addf %355, %11 : vector<16x16xf32>
    %357 = arith.maximumf %341, %356 : vector<16x16xf32>
    %c1_i32_135 = arith.constant 1 : i32
    %358 = tpu.dynamic_rotate %341 by %c1_i32_135 dim 1 : vector<16x16xf32>, i32 -> vector<16x16xf32>
    %359 = arith.addf %358, %6 : vector<16x16xf32>
    %360 = arith.maximumf %357, %359 : vector<16x16xf32>
    %c15_i32_136 = arith.constant 15 : i32
    %361 = tpu.dynamic_rotate %360 by %c15_i32_136 dim 0 : vector<16x16xf32>, i32 -> vector<16x16xf32>
    %362 = arith.addf %361, %21 : vector<16x16xf32>
    %363 = arith.maximumf %360, %362 : vector<16x16xf32>
    %c1_i32_137 = arith.constant 1 : i32
    %364 = tpu.dynamic_rotate %360 by %c1_i32_137 dim 0 : vector<16x16xf32>, i32 -> vector<16x16xf32>
    %365 = arith.addf %364, %16 : vector<16x16xf32>
    %366 = arith.maximumf %363, %365 : vector<16x16xf32>
    %367 = arith.subf %366, %341 : vector<16x16xf32>
    %c14_i32_138 = arith.constant 14 : i32
    %368 = tpu.dynamic_rotate %354 by %c14_i32_138 dim 1 : vector<16x16xf32>, i32 -> vector<16x16xf32>
    %369 = arith.addf %368, %31 : vector<16x16xf32>
    %370 = arith.maximumf %354, %369 : vector<16x16xf32>
    %c15_i32_139 = arith.constant 15 : i32
    %371 = tpu.dynamic_rotate %354 by %c15_i32_139 dim 1 : vector<16x16xf32>, i32 -> vector<16x16xf32>
    %372 = arith.addf %371, %11 : vector<16x16xf32>
    %373 = arith.maximumf %370, %372 : vector<16x16xf32>
    %c1_i32_140 = arith.constant 1 : i32
    %374 = tpu.dynamic_rotate %354 by %c1_i32_140 dim 1 : vector<16x16xf32>, i32 -> vector<16x16xf32>
    %375 = arith.addf %374, %6 : vector<16x16xf32>
    %376 = arith.maximumf %373, %375 : vector<16x16xf32>
    %c2_i32_141 = arith.constant 2 : i32
    %377 = tpu.dynamic_rotate %354 by %c2_i32_141 dim 1 : vector<16x16xf32>, i32 -> vector<16x16xf32>
    %378 = arith.addf %377, %26 : vector<16x16xf32>
    %379 = arith.maximumf %376, %378 : vector<16x16xf32>
    %c14_i32_142 = arith.constant 14 : i32
    %380 = tpu.dynamic_rotate %379 by %c14_i32_142 dim 0 : vector<16x16xf32>, i32 -> vector<16x16xf32>
    %381 = arith.addf %380, %41 : vector<16x16xf32>
    %382 = arith.maximumf %379, %381 : vector<16x16xf32>
    %c15_i32_143 = arith.constant 15 : i32
    %383 = tpu.dynamic_rotate %379 by %c15_i32_143 dim 0 : vector<16x16xf32>, i32 -> vector<16x16xf32>
    %384 = arith.addf %383, %21 : vector<16x16xf32>
    %385 = arith.maximumf %382, %384 : vector<16x16xf32>
    %c1_i32_144 = arith.constant 1 : i32
    %386 = tpu.dynamic_rotate %379 by %c1_i32_144 dim 0 : vector<16x16xf32>, i32 -> vector<16x16xf32>
    %387 = arith.addf %386, %16 : vector<16x16xf32>
    %388 = arith.maximumf %385, %387 : vector<16x16xf32>
    %c2_i32_145 = arith.constant 2 : i32
    %389 = tpu.dynamic_rotate %379 by %c2_i32_145 dim 0 : vector<16x16xf32>, i32 -> vector<16x16xf32>
    %390 = arith.addf %389, %36 : vector<16x16xf32>
    %391 = arith.maximumf %388, %390 : vector<16x16xf32>
    %c14_i32_146 = arith.constant 14 : i32
    %392 = tpu.dynamic_rotate %367 by %c14_i32_146 dim 1 : vector<16x16xf32>, i32 -> vector<16x16xf32>
    %393 = arith.addf %392, %31 : vector<16x16xf32>
    %394 = arith.maximumf %367, %393 : vector<16x16xf32>
    %c15_i32_147 = arith.constant 15 : i32
    %395 = tpu.dynamic_rotate %367 by %c15_i32_147 dim 1 : vector<16x16xf32>, i32 -> vector<16x16xf32>
    %396 = arith.addf %395, %11 : vector<16x16xf32>
    %397 = arith.maximumf %394, %396 : vector<16x16xf32>
    %c1_i32_148 = arith.constant 1 : i32
    %398 = tpu.dynamic_rotate %367 by %c1_i32_148 dim 1 : vector<16x16xf32>, i32 -> vector<16x16xf32>
    %399 = arith.addf %398, %6 : vector<16x16xf32>
    %400 = arith.maximumf %397, %399 : vector<16x16xf32>
    %c2_i32_149 = arith.constant 2 : i32
    %401 = tpu.dynamic_rotate %367 by %c2_i32_149 dim 1 : vector<16x16xf32>, i32 -> vector<16x16xf32>
    %402 = arith.addf %401, %26 : vector<16x16xf32>
    %403 = arith.maximumf %400, %402 : vector<16x16xf32>
    %c14_i32_150 = arith.constant 14 : i32
    %404 = tpu.dynamic_rotate %403 by %c14_i32_150 dim 0 : vector<16x16xf32>, i32 -> vector<16x16xf32>
    %405 = arith.addf %404, %41 : vector<16x16xf32>
    %406 = arith.maximumf %403, %405 : vector<16x16xf32>
    %c15_i32_151 = arith.constant 15 : i32
    %407 = tpu.dynamic_rotate %403 by %c15_i32_151 dim 0 : vector<16x16xf32>, i32 -> vector<16x16xf32>
    %408 = arith.addf %407, %21 : vector<16x16xf32>
    %409 = arith.maximumf %406, %408 : vector<16x16xf32>
    %c1_i32_152 = arith.constant 1 : i32
    %410 = tpu.dynamic_rotate %403 by %c1_i32_152 dim 0 : vector<16x16xf32>, i32 -> vector<16x16xf32>
    %411 = arith.addf %410, %16 : vector<16x16xf32>
    %412 = arith.maximumf %409, %411 : vector<16x16xf32>
    %c2_i32_153 = arith.constant 2 : i32
    %413 = tpu.dynamic_rotate %403 by %c2_i32_153 dim 0 : vector<16x16xf32>, i32 -> vector<16x16xf32>
    %414 = arith.addf %413, %36 : vector<16x16xf32>
    %415 = arith.maximumf %412, %414 : vector<16x16xf32>
    %416 = arith.mulf %354, %415 : vector<16x16xf32>
    %417 = vector.shape_cast %416 : vector<16x16xf32> to vector<1x16x16xf32>
    %cst_154 = arith.constant dense<0.000000e+00> : vector<1xf32>
    %418 = vector.multi_reduction <add>, %417, %cst_154 [1, 2] : vector<1x16x16xf32> to vector<1xf32>
    %419 = vector.shape_cast %418 : vector<1xf32> to vector<1x1x1xf32>
    %420 = vector.extract %419[0, 0, 0] : f32 from vector<1x1x1xf32>
    %421 = vector.broadcast %420 : f32 to vector<1x1xf32>
    %422 = vector.shape_cast %354 : vector<16x16xf32> to vector<1x16x16xf32>
    %cst_155 = arith.constant dense<0.000000e+00> : vector<1xf32>
    %423 = vector.multi_reduction <add>, %422, %cst_155 [1, 2] : vector<1x16x16xf32> to vector<1xf32>
    %424 = vector.shape_cast %423 : vector<1xf32> to vector<1x1x1xf32>
    %425 = vector.extract %424[0, 0, 0] : f32 from vector<1x1x1xf32>
    %426 = vector.broadcast %425 : f32 to vector<1x1xf32>
    %cst_156 = arith.constant 1.000000e-07 : f32
    %427 = vector.broadcast %cst_156 : f32 to vector<1x1xf32>
    %428 = arith.addf %426, %427 : vector<1x1xf32>
    %429 = arith.divf %421, %428 : vector<1x1xf32>
    %430 = arith.mulf %391, %367 : vector<16x16xf32>
    %431 = vector.shape_cast %430 : vector<16x16xf32> to vector<1x16x16xf32>
    %cst_157 = arith.constant dense<0.000000e+00> : vector<1xf32>
    %432 = vector.multi_reduction <add>, %431, %cst_157 [1, 2] : vector<1x16x16xf32> to vector<1xf32>
    %433 = vector.shape_cast %432 : vector<1xf32> to vector<1x1x1xf32>
    %434 = vector.extract %433[0, 0, 0] : f32 from vector<1x1x1xf32>
    %435 = vector.broadcast %434 : f32 to vector<1x1xf32>
    %436 = vector.shape_cast %367 : vector<16x16xf32> to vector<1x16x16xf32>
    %cst_158 = arith.constant dense<0.000000e+00> : vector<1xf32>
    %437 = vector.multi_reduction <add>, %436, %cst_158 [1, 2] : vector<1x16x16xf32> to vector<1xf32>
    %438 = vector.shape_cast %437 : vector<1xf32> to vector<1x1x1xf32>
    %439 = vector.extract %438[0, 0, 0] : f32 from vector<1x1x1xf32>
    %440 = vector.broadcast %439 : f32 to vector<1x1xf32>
    %cst_159 = arith.constant 1.000000e-07 : f32
    %441 = vector.broadcast %cst_159 : f32 to vector<1x1xf32>
    %442 = arith.addf %440, %441 : vector<1x1xf32>
    %443 = arith.divf %435, %442 : vector<1x1xf32>
    %cst_160 = arith.constant 2.000000e+00 : f32
    %444 = vector.broadcast %cst_160 : f32 to vector<1x1xf32>
    %445 = arith.mulf %444, %429 : vector<1x1xf32>
    %446 = arith.mulf %445, %443 : vector<1x1xf32>
    %447 = arith.addf %429, %443 : vector<1x1xf32>
    %cst_161 = arith.constant 1.000000e-07 : f32
    %448 = vector.broadcast %cst_161 : f32 to vector<1x1xf32>
    %449 = arith.addf %447, %448 : vector<1x1xf32>
    %450 = arith.divf %446, %449 : vector<1x1xf32>
    %c0_162 = arith.constant 0 : index
    %c2_163 = arith.constant 2 : index
    %c0_164 = arith.constant 0 : index
    %451 = vector.load %arg3[%c0_162, %c2_163, %c0_164] : memref<1x4x3xf32, #tpu.memory_space<vmem>>, vector<1x1x1xf32>
    %452 = vector.shape_cast %451 : vector<1x1x1xf32> to vector<1x1xf32>
    %453 = vector.shape_cast %331 : vector<1x1xf32> to vector<1x1x1xf32>
    tpu.vector_store %arg3[%c0_162, %c2_163, %c0_164], %453 {strides = array<i32>} : memref<1x4x3xf32, #tpu.memory_space<vmem>>, vector<1x1x1xf32>,
    %c0_165 = arith.constant 0 : index
    %c2_166 = arith.constant 2 : index
    %c1_167 = arith.constant 1 : index
    %454 = vector.load %arg3[%c0_165, %c2_166, %c1_167] : memref<1x4x3xf32, #tpu.memory_space<vmem>>, vector<1x1x1xf32>
    %455 = vector.shape_cast %454 : vector<1x1x1xf32> to vector<1x1xf32>
    %456 = vector.shape_cast %337 : vector<1x1xf32> to vector<1x1x1xf32>
    tpu.vector_store %arg3[%c0_165, %c2_166, %c1_167], %456 {strides = array<i32>} : memref<1x4x3xf32, #tpu.memory_space<vmem>>, vector<1x1x1xf32>,
    %cst_168 = arith.constant 1.000000e+00 : f32
    %457 = vector.broadcast %cst_168 : f32 to vector<1x1xf32>
    %458 = arith.subf %457, %450 : vector<1x1xf32>
    %c0_169 = arith.constant 0 : index
    %c2_170 = arith.constant 2 : index
    %c2_171 = arith.constant 2 : index
    %459 = vector.load %arg3[%c0_169, %c2_170, %c2_171] : memref<1x4x3xf32, #tpu.memory_space<vmem>>, vector<1x1x1xf32>
    %460 = vector.shape_cast %459 : vector<1x1x1xf32> to vector<1x1xf32>
    %461 = vector.shape_cast %458 : vector<1x1xf32> to vector<1x1x1xf32>
    tpu.vector_store %arg3[%c0_169, %c2_170, %c2_171], %461 {strides = array<i32>} : memref<1x4x3xf32, #tpu.memory_space<vmem>>, vector<1x1x1xf32>,
    %c3 = arith.constant 3 : index
    %c0_172 = arith.constant 0 : index
    %c0_173 = arith.constant 0 : index
    %462 = vector.load %arg1[%c3, %c0_172, %c0_173] : memref<4x16x16xf32, #tpu.memory_space<vmem>>, vector<1x16x16xf32>
    %463 = vector.shape_cast %462 : vector<1x16x16xf32> to vector<16x16xf32>
    %c3_174 = arith.constant 3 : index
    %c0_175 = arith.constant 0 : index
    %c0_176 = arith.constant 0 : index
    %464 = vector.load %arg2[%c3_174, %c0_175, %c0_176] : memref<4x16x16xf32, #tpu.memory_space<vmem>>, vector<1x16x16xf32>
    %465 = vector.shape_cast %464 : vector<1x16x16xf32> to vector<16x16xf32>
    %466 = arith.mulf %463, %465 : vector<16x16xf32>
    %467 = vector.shape_cast %466 : vector<16x16xf32> to vector<1x16x16xf32>
    %cst_177 = arith.constant dense<0.000000e+00> : vector<1xf32>
    %468 = vector.multi_reduction <add>, %467, %cst_177 [1, 2] : vector<1x16x16xf32> to vector<1xf32>
    %469 = vector.shape_cast %468 : vector<1xf32> to vector<1x1x1xf32>
    %470 = vector.extract %469[0, 0, 0] : f32 from vector<1x1x1xf32>
    %471 = vector.broadcast %470 : f32 to vector<1x1xf32>
    %472 = arith.addf %463, %465 : vector<16x16xf32>
    %473 = vector.shape_cast %472 : vector<16x16xf32> to vector<1x16x16xf32>
    %cst_178 = arith.constant dense<0.000000e+00> : vector<1xf32>
    %474 = vector.multi_reduction <add>, %473, %cst_178 [1, 2] : vector<1x16x16xf32> to vector<1xf32>
    %475 = vector.shape_cast %474 : vector<1xf32> to vector<1x1x1xf32>
    %476 = vector.extract %475[0, 0, 0] : f32 from vector<1x1x1xf32>
    %477 = vector.broadcast %476 : f32 to vector<1x1xf32>
    %cst_179 = arith.constant 1.000000e+00 : f32
    %478 = vector.broadcast %cst_179 : f32 to vector<16x16xf32>
    %479 = arith.subf %478, %463 : vector<16x16xf32>
    %cst_180 = arith.constant 1.000000e+00 : f32
    %480 = vector.broadcast %cst_180 : f32 to vector<16x16xf32>
    %481 = arith.subf %480, %465 : vector<16x16xf32>
    %c15_i32_181 = arith.constant 15 : i32
    %482 = tpu.dynamic_rotate %479 by %c15_i32_181 dim 1 : vector<16x16xf32>, i32 -> vector<16x16xf32>
    %483 = arith.addf %482, %11 : vector<16x16xf32>
    %484 = arith.maximumf %479, %483 : vector<16x16xf32>
    %c1_i32_182 = arith.constant 1 : i32
    %485 = tpu.dynamic_rotate %479 by %c1_i32_182 dim 1 : vector<16x16xf32>, i32 -> vector<16x16xf32>
    %486 = arith.addf %485, %6 : vector<16x16xf32>
    %487 = arith.maximumf %484, %486 : vector<16x16xf32>
    %c15_i32_183 = arith.constant 15 : i32
    %488 = tpu.dynamic_rotate %487 by %c15_i32_183 dim 0 : vector<16x16xf32>, i32 -> vector<16x16xf32>
    %489 = arith.addf %488, %21 : vector<16x16xf32>
    %490 = arith.maximumf %487, %489 : vector<16x16xf32>
    %c1_i32_184 = arith.constant 1 : i32
    %491 = tpu.dynamic_rotate %487 by %c1_i32_184 dim 0 : vector<16x16xf32>, i32 -> vector<16x16xf32>
    %492 = arith.addf %491, %16 : vector<16x16xf32>
    %493 = arith.maximumf %490, %492 : vector<16x16xf32>
    %494 = arith.subf %493, %479 : vector<16x16xf32>
    %c15_i32_185 = arith.constant 15 : i32
    %495 = tpu.dynamic_rotate %481 by %c15_i32_185 dim 1 : vector<16x16xf32>, i32 -> vector<16x16xf32>
    %496 = arith.addf %495, %11 : vector<16x16xf32>
    %497 = arith.maximumf %481, %496 : vector<16x16xf32>
    %c1_i32_186 = arith.constant 1 : i32
    %498 = tpu.dynamic_rotate %481 by %c1_i32_186 dim 1 : vector<16x16xf32>, i32 -> vector<16x16xf32>
    %499 = arith.addf %498, %6 : vector<16x16xf32>
    %500 = arith.maximumf %497, %499 : vector<16x16xf32>
    %c15_i32_187 = arith.constant 15 : i32
    %501 = tpu.dynamic_rotate %500 by %c15_i32_187 dim 0 : vector<16x16xf32>, i32 -> vector<16x16xf32>
    %502 = arith.addf %501, %21 : vector<16x16xf32>
    %503 = arith.maximumf %500, %502 : vector<16x16xf32>
    %c1_i32_188 = arith.constant 1 : i32
    %504 = tpu.dynamic_rotate %500 by %c1_i32_188 dim 0 : vector<16x16xf32>, i32 -> vector<16x16xf32>
    %505 = arith.addf %504, %16 : vector<16x16xf32>
    %506 = arith.maximumf %503, %505 : vector<16x16xf32>
    %507 = arith.subf %506, %481 : vector<16x16xf32>
    %c14_i32_189 = arith.constant 14 : i32
    %508 = tpu.dynamic_rotate %494 by %c14_i32_189 dim 1 : vector<16x16xf32>, i32 -> vector<16x16xf32>
    %509 = arith.addf %508, %31 : vector<16x16xf32>
    %510 = arith.maximumf %494, %509 : vector<16x16xf32>
    %c15_i32_190 = arith.constant 15 : i32
    %511 = tpu.dynamic_rotate %494 by %c15_i32_190 dim 1 : vector<16x16xf32>, i32 -> vector<16x16xf32>
    %512 = arith.addf %511, %11 : vector<16x16xf32>
    %513 = arith.maximumf %510, %512 : vector<16x16xf32>
    %c1_i32_191 = arith.constant 1 : i32
    %514 = tpu.dynamic_rotate %494 by %c1_i32_191 dim 1 : vector<16x16xf32>, i32 -> vector<16x16xf32>
    %515 = arith.addf %514, %6 : vector<16x16xf32>
    %516 = arith.maximumf %513, %515 : vector<16x16xf32>
    %c2_i32_192 = arith.constant 2 : i32
    %517 = tpu.dynamic_rotate %494 by %c2_i32_192 dim 1 : vector<16x16xf32>, i32 -> vector<16x16xf32>
    %518 = arith.addf %517, %26 : vector<16x16xf32>
    %519 = arith.maximumf %516, %518 : vector<16x16xf32>
    %c14_i32_193 = arith.constant 14 : i32
    %520 = tpu.dynamic_rotate %519 by %c14_i32_193 dim 0 : vector<16x16xf32>, i32 -> vector<16x16xf32>
    %521 = arith.addf %520, %41 : vector<16x16xf32>
    %522 = arith.maximumf %519, %521 : vector<16x16xf32>
    %c15_i32_194 = arith.constant 15 : i32
    %523 = tpu.dynamic_rotate %519 by %c15_i32_194 dim 0 : vector<16x16xf32>, i32 -> vector<16x16xf32>
    %524 = arith.addf %523, %21 : vector<16x16xf32>
    %525 = arith.maximumf %522, %524 : vector<16x16xf32>
    %c1_i32_195 = arith.constant 1 : i32
    %526 = tpu.dynamic_rotate %519 by %c1_i32_195 dim 0 : vector<16x16xf32>, i32 -> vector<16x16xf32>
    %527 = arith.addf %526, %16 : vector<16x16xf32>
    %528 = arith.maximumf %525, %527 : vector<16x16xf32>
    %c2_i32_196 = arith.constant 2 : i32
    %529 = tpu.dynamic_rotate %519 by %c2_i32_196 dim 0 : vector<16x16xf32>, i32 -> vector<16x16xf32>
    %530 = arith.addf %529, %36 : vector<16x16xf32>
    %531 = arith.maximumf %528, %530 : vector<16x16xf32>
    %c14_i32_197 = arith.constant 14 : i32
    %532 = tpu.dynamic_rotate %507 by %c14_i32_197 dim 1 : vector<16x16xf32>, i32 -> vector<16x16xf32>
    %533 = arith.addf %532, %31 : vector<16x16xf32>
    %534 = arith.maximumf %507, %533 : vector<16x16xf32>
    %c15_i32_198 = arith.constant 15 : i32
    %535 = tpu.dynamic_rotate %507 by %c15_i32_198 dim 1 : vector<16x16xf32>, i32 -> vector<16x16xf32>
    %536 = arith.addf %535, %11 : vector<16x16xf32>
    %537 = arith.maximumf %534, %536 : vector<16x16xf32>
    %c1_i32_199 = arith.constant 1 : i32
    %538 = tpu.dynamic_rotate %507 by %c1_i32_199 dim 1 : vector<16x16xf32>, i32 -> vector<16x16xf32>
    %539 = arith.addf %538, %6 : vector<16x16xf32>
    %540 = arith.maximumf %537, %539 : vector<16x16xf32>
    %c2_i32_200 = arith.constant 2 : i32
    %541 = tpu.dynamic_rotate %507 by %c2_i32_200 dim 1 : vector<16x16xf32>, i32 -> vector<16x16xf32>
    %542 = arith.addf %541, %26 : vector<16x16xf32>
    %543 = arith.maximumf %540, %542 : vector<16x16xf32>
    %c14_i32_201 = arith.constant 14 : i32
    %544 = tpu.dynamic_rotate %543 by %c14_i32_201 dim 0 : vector<16x16xf32>, i32 -> vector<16x16xf32>
    %545 = arith.addf %544, %41 : vector<16x16xf32>
    %546 = arith.maximumf %543, %545 : vector<16x16xf32>
    %c15_i32_202 = arith.constant 15 : i32
    %547 = tpu.dynamic_rotate %543 by %c15_i32_202 dim 0 : vector<16x16xf32>, i32 -> vector<16x16xf32>
    %548 = arith.addf %547, %21 : vector<16x16xf32>
    %549 = arith.maximumf %546, %548 : vector<16x16xf32>
    %c1_i32_203 = arith.constant 1 : i32
    %550 = tpu.dynamic_rotate %543 by %c1_i32_203 dim 0 : vector<16x16xf32>, i32 -> vector<16x16xf32>
    %551 = arith.addf %550, %16 : vector<16x16xf32>
    %552 = arith.maximumf %549, %551 : vector<16x16xf32>
    %c2_i32_204 = arith.constant 2 : i32
    %553 = tpu.dynamic_rotate %543 by %c2_i32_204 dim 0 : vector<16x16xf32>, i32 -> vector<16x16xf32>
    %554 = arith.addf %553, %36 : vector<16x16xf32>
    %555 = arith.maximumf %552, %554 : vector<16x16xf32>
    %556 = arith.mulf %494, %555 : vector<16x16xf32>
    %557 = vector.shape_cast %556 : vector<16x16xf32> to vector<1x16x16xf32>
    %cst_205 = arith.constant dense<0.000000e+00> : vector<1xf32>
    %558 = vector.multi_reduction <add>, %557, %cst_205 [1, 2] : vector<1x16x16xf32> to vector<1xf32>
    %559 = vector.shape_cast %558 : vector<1xf32> to vector<1x1x1xf32>
    %560 = vector.extract %559[0, 0, 0] : f32 from vector<1x1x1xf32>
    %561 = vector.broadcast %560 : f32 to vector<1x1xf32>
    %562 = vector.shape_cast %494 : vector<16x16xf32> to vector<1x16x16xf32>
    %cst_206 = arith.constant dense<0.000000e+00> : vector<1xf32>
    %563 = vector.multi_reduction <add>, %562, %cst_206 [1, 2] : vector<1x16x16xf32> to vector<1xf32>
    %564 = vector.shape_cast %563 : vector<1xf32> to vector<1x1x1xf32>
    %565 = vector.extract %564[0, 0, 0] : f32 from vector<1x1x1xf32>
    %566 = vector.broadcast %565 : f32 to vector<1x1xf32>
    %cst_207 = arith.constant 1.000000e-07 : f32
    %567 = vector.broadcast %cst_207 : f32 to vector<1x1xf32>
    %568 = arith.addf %566, %567 : vector<1x1xf32>
    %569 = arith.divf %561, %568 : vector<1x1xf32>
    %570 = arith.mulf %531, %507 : vector<16x16xf32>
    %571 = vector.shape_cast %570 : vector<16x16xf32> to vector<1x16x16xf32>
    %cst_208 = arith.constant dense<0.000000e+00> : vector<1xf32>
    %572 = vector.multi_reduction <add>, %571, %cst_208 [1, 2] : vector<1x16x16xf32> to vector<1xf32>
    %573 = vector.shape_cast %572 : vector<1xf32> to vector<1x1x1xf32>
    %574 = vector.extract %573[0, 0, 0] : f32 from vector<1x1x1xf32>
    %575 = vector.broadcast %574 : f32 to vector<1x1xf32>
    %576 = vector.shape_cast %507 : vector<16x16xf32> to vector<1x16x16xf32>
    %cst_209 = arith.constant dense<0.000000e+00> : vector<1xf32>
    %577 = vector.multi_reduction <add>, %576, %cst_209 [1, 2] : vector<1x16x16xf32> to vector<1xf32>
    %578 = vector.shape_cast %577 : vector<1xf32> to vector<1x1x1xf32>
    %579 = vector.extract %578[0, 0, 0] : f32 from vector<1x1x1xf32>
    %580 = vector.broadcast %579 : f32 to vector<1x1xf32>
    %cst_210 = arith.constant 1.000000e-07 : f32
    %581 = vector.broadcast %cst_210 : f32 to vector<1x1xf32>
    %582 = arith.addf %580, %581 : vector<1x1xf32>
    %583 = arith.divf %575, %582 : vector<1x1xf32>
    %cst_211 = arith.constant 2.000000e+00 : f32
    %584 = vector.broadcast %cst_211 : f32 to vector<1x1xf32>
    %585 = arith.mulf %584, %569 : vector<1x1xf32>
    %586 = arith.mulf %585, %583 : vector<1x1xf32>
    %587 = arith.addf %569, %583 : vector<1x1xf32>
    %cst_212 = arith.constant 1.000000e-07 : f32
    %588 = vector.broadcast %cst_212 : f32 to vector<1x1xf32>
    %589 = arith.addf %587, %588 : vector<1x1xf32>
    %590 = arith.divf %586, %589 : vector<1x1xf32>
    %c0_213 = arith.constant 0 : index
    %c3_214 = arith.constant 3 : index
    %c0_215 = arith.constant 0 : index
    %591 = vector.load %arg3[%c0_213, %c3_214, %c0_215] : memref<1x4x3xf32, #tpu.memory_space<vmem>>, vector<1x1x1xf32>
    %592 = vector.shape_cast %591 : vector<1x1x1xf32> to vector<1x1xf32>
    %593 = vector.shape_cast %471 : vector<1x1xf32> to vector<1x1x1xf32>
    tpu.vector_store %arg3[%c0_213, %c3_214, %c0_215], %593 {strides = array<i32>} : memref<1x4x3xf32, #tpu.memory_space<vmem>>, vector<1x1x1xf32>,
    %c0_216 = arith.constant 0 : index
    %c3_217 = arith.constant 3 : index
    %c1_218 = arith.constant 1 : index
    %594 = vector.load %arg3[%c0_216, %c3_217, %c1_218] : memref<1x4x3xf32, #tpu.memory_space<vmem>>, vector<1x1x1xf32>
    %595 = vector.shape_cast %594 : vector<1x1x1xf32> to vector<1x1xf32>
    %596 = vector.shape_cast %477 : vector<1x1xf32> to vector<1x1x1xf32>
    tpu.vector_store %arg3[%c0_216, %c3_217, %c1_218], %596 {strides = array<i32>} : memref<1x4x3xf32, #tpu.memory_space<vmem>>, vector<1x1x1xf32>,
    %cst_219 = arith.constant 1.000000e+00 : f32
    %597 = vector.broadcast %cst_219 : f32 to vector<1x1xf32>
    %598 = arith.subf %597, %590 : vector<1x1xf32>
    %c0_220 = arith.constant 0 : index
    %c3_221 = arith.constant 3 : index
    %c2_222 = arith.constant 2 : index
    %599 = vector.load %arg3[%c0_220, %c3_221, %c2_222] : memref<1x4x3xf32, #tpu.memory_space<vmem>>, vector<1x1x1xf32>
    %600 = vector.shape_cast %599 : vector<1x1x1xf32> to vector<1x1xf32>
    %601 = vector.shape_cast %598 : vector<1x1xf32> to vector<1x1x1xf32>
    tpu.vector_store %arg3[%c0_220, %c3_221, %c2_222], %601 {strides = array<i32>} : memref<1x4x3xf32, #tpu.memory_space<vmem>>, vector<1x1x1xf32>,
    return
  }
  func.func @transform_0(%arg0: i32) -> (i32, i32, i32) {
    %c0_i32 = arith.constant 0 : i32
    %c0_i32_0 = arith.constant 0 : i32
    %c0_i32_1 = arith.constant 0 : i32
    return %arg0, %c0_i32, %c0_i32_0 : i32, i32, i32
  }
  func.func @transform_1(%arg0: i32) -> (i32, i32, i32) {
    %c0_i32 = arith.constant 0 : i32
    %c0_i32_0 = arith.constant 0 : i32
    %c0_i32_1 = arith.constant 0 : i32
    return %arg0, %c0_i32, %c0_i32_0 : i32, i32, i32
  }
  func.func @transform_2(%arg0: i32) -> (i32, i32, i32) {
    %c0_i32 = arith.constant 0 : i32
    %c0_i32_0 = arith.constant 0 : i32
    %c0_i32_1 = arith.constant 0 : i32
    return %arg0, %c0_i32, %c0_i32_0 : i32, i32, i32
  }
}

</mosaic_0001>

<llo_original>
// kernel: tpu_custom_call.1
$region0: #{tpu_custom_call.1}
  #allocation0 [shape = 'u32[]', space=smem, size = 0x4, offset = 0x4, fixed_abs, tag = 'smem constant byte address 0x4 - core index']
  #allocation1 [shape = 'u32[72,128]{1,0:T(1,128)}', space=vmem, size = 0x9000, scoped, tag = 'internal scratch']
  %s0 = inlined_call_operand.hbm [shape: f32[8,16,16], index: 0, kind: input, shape index: {}]
  %s1 = inlined_call_operand.hbm [shape: f32[8,16,16], index: 1, kind: input, shape index: {}]
  %s2 = inlined_call_operand.vmem [shape: f32[2,4,3], index: 2, kind: output, shape index: {}]
  %s3 = sld [smem:[#allocation0]]
  $region49: #{tpu_custom_call.1} parent=0
    _
  %s5 = ssub.s32 1, %s3
  %s6 = scalar_select 0, %s5, %s3
  $region1: #{tpu_custom_call.1} parent=0
    #allocation2 [shape = 'u8[65536]{0}', space=vmem, size = 0x10000, scoped, tag = 'input window, operand 0']
    #allocation3 [shape = 's32[2]{0}', space=sflag, size = 0x8, scoped, tag = 'scoped memory for tpu_custom_call.1']
    #allocation4 [shape = 'u8[65536]{0}', space=vmem, size = 0x10000, scoped, tag = 'input window, operand 1']
    #allocation5 [shape = 's32[2]{0}', space=sflag, size = 0x8, scoped, tag = 'scoped memory for tpu_custom_call.1']
    %7 = vsyncpa [#allocation3], 0
    %s8 = scalar_lea.sflag [#allocation3], 1
    %9 = vsyncpa %s8, 0
    %10 = vsyncpa [#allocation5], 0
    %s11 = scalar_lea.sflag [#allocation5], 1
    %12 = vsyncpa %s11, 0
    loop: start=0, step=1, limit=4
    $region2: #{tpu_custom_call.1} parent=1 // loop_pre_header
      _
    $region3: #{tpu_custom_call.1} parent=1 // loop_header
      %s14 = sphi 0, %s18
      %p15 = scmp.ge.s32.totalorder %s14, 4
      %s24 = sphi 0, %s26
      %s27 = sphi 0, %s24
      %s28 = sphi 0, %s27
      %s44 = sphi 0, %s28
      %s50 = sphi 0, %s52
      %s53 = sphi 0, %s50
      %s54 = sphi 0, %s53
      %s70 = sphi 0, %s54
      %s76 = sphi 0, %s78
      %s79 = sphi 0, %s76
      %s80 = sphi 0, %s79
      %s96 = sphi 0, %s80
    $region4: #{tpu_custom_call.1} parent=1 // loop_header_branch
      %17 = sbr.rel (%p15) target = $region8
    $region5: #{tpu_custom_call.1} parent=1 // loop_body
      %s19 = ssub.s32 %s14, 1
      %s20 = ssub.s32 %s14, 2
      %s21 = sadd.s32 %s14, 1
      %s22 = ssub.s32 %s14, %s21
      %p23 = scmp.eq.s32.totalorder %s22, 0
      %s25 = sadd.s32 %s24, 1
      %s26 = scalar_select %p23, %s24, %s25
      %p29 = pneg %p23
      %p30 = scmp.eq.s32.totalorder %s14, 1
      %p31 = por %p29, %p30
      %p32 = scmp.ne.s32.totalorder %s24, %s27
      %p33 = scmp.eq.s32.totalorder %s14, 0
      %p34 = por %p32, %p33
      %p35 = scmp.ne.s32.totalorder %s24, %s27
      %p36 = scmp.eq.s32.totalorder %s19, 1
      %p37 = por %p35, %p36
      %p38 = scmp.ne.s32.totalorder %s27, %s28
      %p39 = scmp.eq.s32.totalorder %s19, 0
      %p40 = por %p38, %p39
      %p41 = scmp.ne.s32.totalorder %s27, %s28
      %p42 = scmp.eq.s32.totalorder %s20, 1
      %p43 = por %p41, %p42
      %p45 = scmp.ne.s32.totalorder %s28, %s44
      %p46 = scmp.eq.s32.totalorder %s20, 0
      %p47 = por %p45, %p46
      %s48 = ssub.s32 %s14, %s21
      %p49 = scmp.eq.s32.totalorder %s48, 0
      %s51 = sadd.s32 %s50, 1
      %s52 = scalar_select %p49, %s50, %s51
      %p55 = pneg %p49
      %p56 = scmp.eq.s32.totalorder %s14, 1
      %p57 = por %p55, %p56
      %p58 = scmp.ne.s32.totalorder %s50, %s53
      %p59 = scmp.eq.s32.totalorder %s14, 0
      %p60 = por %p58, %p59
      %p61 = scmp.ne.s32.totalorder %s50, %s53
      %p62 = scmp.eq.s32.totalorder %s19, 1
      %p63 = por %p61, %p62
      %p64 = scmp.ne.s32.totalorder %s53, %s54
      %p65 = scmp.eq.s32.totalorder %s19, 0
      %p66 = por %p64, %p65
      %p67 = scmp.ne.s32.totalorder %s53, %s54
      %p68 = scmp.eq.s32.totalorder %s20, 1
      %p69 = por %p67, %p68
      %p71 = scmp.ne.s32.totalorder %s54, %s70
      %p72 = scmp.eq.s32.totalorder %s20, 0
      %p73 = por %p71, %p72
      %s74 = ssub.s32 %s14, %s21
      %p75 = scmp.eq.s32.totalorder %s74, 0
      %s77 = sadd.s32 %s76, 1
      %s78 = scalar_select %p75, %s76, %s77
      %p81 = pneg %p75
      %p82 = scmp.eq.s32.totalorder %s14, 1
      %p83 = por %p81, %p82
      %p84 = scmp.ne.s32.totalorder %s76, %s79
      %p85 = scmp.eq.s32.totalorder %s14, 0
      %p86 = por %p84, %p85
      %p87 = scmp.ne.s32.totalorder %s76, %s79
      %p88 = scmp.eq.s32.totalorder %s19, 1
      %p89 = por %p87, %p88
      %p90 = scmp.ne.s32.totalorder %s79, %s80
      %p91 = scmp.eq.s32.totalorder %s19, 0
      %p92 = por %p90, %p91
      %p93 = scmp.ne.s32.totalorder %s79, %s80
      %p94 = scmp.eq.s32.totalorder %s20, 1
      %p95 = por %p93, %p94
      %p97 = scmp.ne.s32.totalorder %s80, %s96
      %p98 = scmp.eq.s32.totalorder %s20, 0
      %p99 = por %p97, %p98
      %p100 = scmp.le.s32.totalorder 1, %s14
      %p101 = scmp.lt.s32.totalorder %s14, 3
      %p102 = pnand %p100, %p101
      %p103 = pneg %p102
      // Predicated region
      $region9: #{tpu_custom_call.1} parent=5 // pred_check
        _
      $region10: #{tpu_custom_call.1} parent=5 // pred_check_branch
        %105 = sbr.rel (%p102) target = $region12
      $region11: #{tpu_custom_call.1} parent=5 // pred_region
        %s106 = ssub.s32 %s14, 1
      $region12: #{tpu_custom_call.1} parent=5 // pred_fallthru
        _
      %p107 = scmp.lt.s32.totalorder %s14, 2
      // Predicated region
      $region13: #{tpu_custom_call.1} parent=5 // pred_check
        %p108 = pneg %p107
      $region14: #{tpu_custom_call.1} parent=5 // pred_check_branch
        %110 = sbr.rel (%p108) target = $region16
      $region15: #{tpu_custom_call.1} parent=5 // pred_region
        // Predicated region
        $region17: #{tpu_custom_call.1} parent=15 // pred_check
          %p111 = pneg %p34
        $region18: #{tpu_custom_call.1} parent=15 // pred_check_branch
          %113 = sbr.rel (%p111) target = $region20
        $region19: #{tpu_custom_call.1} parent=15 // pred_region
          %s114 = sand.u32 %s24, 1
          %s115 = scalar_lea.sflag [#allocation3], %s114
          %s116 = sand.u32 %s24, 1
          %s117 = smul.addr %s116, 64
          %s118 = scalar_lea.vmem [#allocation2], %s117
          %s119 = smul.u32 4, %s14
          %121 = vsyncadd %s115, 0
          %s122 = smul.addr %s119, 2
          %s123 = smul.addr %s122, 8
          %s124 = scalar_lea.hbm %s0, %s123
          %s125 = sshll.u32 %s124, 4
          %s126 = int_to_ptr.hbm [resolvable:$true] %s125
          %s127 = sshll.u32 %s118, 4
          %s128 = int_to_ptr.vmem [resolvable:$true] %s127
          %133 = dma.hbm_to_vmem [thread:$0]  %s126, 1024, %s128, %s115, 128, 128, 8
        $region20: #{tpu_custom_call.1} parent=15 // pred_fallthru
          _
        // Predicated region
        $region21: #{tpu_custom_call.1} parent=15 // pred_check
          %p134 = pneg %p60
        $region22: #{tpu_custom_call.1} parent=15 // pred_check_branch
          %136 = sbr.rel (%p134) target = $region24
        $region23: #{tpu_custom_call.1} parent=15 // pred_region
          %s137 = sand.u32 %s50, 1
          %s138 = scalar_lea.sflag [#allocation5], %s137
          %s139 = sand.u32 %s50, 1
          %s140 = smul.addr %s139, 64
          %s141 = scalar_lea.vmem [#allocation4], %s140
          %s142 = smul.u32 4, %s14
          %144 = vsyncadd %s138, 0
          %s145 = smul.addr %s142, 2
          %s146 = smul.addr %s145, 8
          %s147 = scalar_lea.hbm %s1, %s146
          %s148 = sshll.u32 %s147, 4
          %s149 = int_to_ptr.hbm [resolvable:$true] %s148
          %s150 = sshll.u32 %s141, 4
          %s151 = int_to_ptr.vmem [resolvable:$true] %s150
          %156 = dma.hbm_to_vmem [thread:$0]  %s149, 1024, %s151, %s138, 128, 128, 8
        $region24: #{tpu_custom_call.1} parent=15 // pred_fallthru
          _
      $region16: #{tpu_custom_call.1} parent=5 // pred_fallthru
        _
      %p157 = scmp.le.s32.totalorder 1, %s14
      %p158 = scmp.lt.s32.totalorder %s14, 3
      %p159 = pnand %p157, %p158
      %p160 = pneg %p159
      // Predicated region
      $region25: #{tpu_custom_call.1} parent=5 // pred_check
        _
      $region26: #{tpu_custom_call.1} parent=5 // pred_check_branch
        %162 = sbr.rel (%p159) target = $region28
      $region27: #{tpu_custom_call.1} parent=5 // pred_region
        %s163 = ssub.s32 %s14, 1
        %s164 = sand.u32 %s27, 1
        %s165 = scalar_lea.sflag [#allocation3], %s164
        %s166 = sand.u32 %s27, 1
        %s167 = smul.addr %s166, 64
        %s168 = scalar_lea.vmem [#allocation2], %s167
        // Predicated region
        $region29: #{tpu_custom_call.1} parent=27 // pred_check
          %p169 = pneg %p40
        $region30: #{tpu_custom_call.1} parent=27 // pred_check_branch
          %171 = sbr.rel (%p169) target = $region32
        $region31: #{tpu_custom_call.1} parent=27 // pred_region
          %173 = dma.done %s165, 1024
        $region32: #{tpu_custom_call.1} parent=27 // pred_fallthru
          _
        %s174 = sand.u32 %s53, 1
        %s175 = scalar_lea.sflag [#allocation5], %s174
        %s176 = sand.u32 %s53, 1
        %s177 = smul.addr %s176, 64
        %s178 = scalar_lea.vmem [#allocation4], %s177
        // Predicated region
        $region33: #{tpu_custom_call.1} parent=27 // pred_check
          %p179 = pneg %p66
        $region34: #{tpu_custom_call.1} parent=27 // pred_check_branch
          %181 = sbr.rel (%p179) target = $region36
        $region35: #{tpu_custom_call.1} parent=27 // pred_region
          %183 = dma.done %s175, 1024
        $region36: #{tpu_custom_call.1} parent=27 // pred_fallthru
          _
        %s184 = sand.u32 %s27, 1
        %s185 = scalar_lea.sflag [#allocation3], %s184
        %s186 = sand.u32 %s27, 1
        %s187 = smul.addr %s186, 64
        %s188 = scalar_lea.vmem [#allocation2], %s187
        %p189 = pneg %p40
        %p190 = pneg %p37
        %s191 = sand.u32 %s53, 1
        %s192 = scalar_lea.sflag [#allocation5], %s191
        %s193 = sand.u32 %s53, 1
        %s194 = smul.addr %s193, 64
        %s195 = scalar_lea.vmem [#allocation4], %s194
        %p196 = pneg %p66
        %p197 = pneg %p63
        %p198 = pneg %p92
        %p199 = pneg %p89
        %p200 = scmp.lt.s32.totalorder %s19, 1
        %s201 = scalar_select %p200, %s19, 1
        %s202 = smul.addr %s201, 4
        %s203 = scalar_lea.vmem %s2, %s202
        %s204 = smul.u32 4, %s19
        %s205 = smul.u32 4, %s19
        %p206 = scmp.lt.s32.totalorder %s19, 1
        %s207 = scalar_select %p206, %s19, 1
        %s208 = smul.addr %s207, 4
        %s209 = scalar_lea.vmem %s2, %s208
        %v210 = vlaneseq
        %v211 = vshrl.u32 %v210, 7
        %v212 = vadd.s32 %v211, 8
        %v213 = vlaneseq
        %v214 = vand.u32 %v213, 127
        %vm215 = vcmp.ge.s32.totalorder %v214, 1
        %v216 = vsel %vm215, 0.0, -inf
        %vm217 = vcmp.lt.s32.totalorder %v214, 15
        %v218 = vsel %vm217, 0.0, -inf
        %vm219 = vcmp.ge.s32.totalorder %v211, 1
        %vm220 = vcmp.ge.s32.totalorder %v212, 1
        %v221 = vsel %vm219, 0.0, -inf
        %v222 = vsel %vm220, 0.0, -inf
        %vm223 = vcmp.lt.s32.totalorder %v211, 15
        %vm224 = vcmp.lt.s32.totalorder %v212, 15
        %v225 = vsel %vm223, 0.0, -inf
        %v226 = vsel %vm224, 0.0, -inf
        %vm227 = vcmp.ge.s32.totalorder %v214, 2
        %v228 = vsel %vm227, 0.0, -inf
        %vm229 = vcmp.lt.s32.totalorder %v214, 14
        %v230 = vsel %vm229, 0.0, -inf
        %vm231 = vcmp.ge.s32.totalorder %v211, 2
        %vm232 = vcmp.ge.s32.totalorder %v212, 2
        %v233 = vsel %vm231, 0.0, -inf
        %v234 = vsel %vm232, 0.0, -inf
        %vm235 = vcmp.lt.s32.totalorder %v211, 14
        %vm236 = vcmp.lt.s32.totalorder %v212, 14
        %v237 = vsel %vm235, 0.0, -inf
        %v238 = vsel %vm236, 0.0, -inf
        %v239 = vld [vmem:[%s168] sm:$0xff]
        %v240 = vld [vmem:[%s168 + $0x8] sm:$0xff]
        %v241 = vld [vmem:[%s178] sm:$0xff]
        %v242 = vld [vmem:[%s178 + $0x8] sm:$0xff]
        %v243 = vmul.f32 %v239, %v241
        %v244 = vmul.f32 %v240, %v242
        %vm245 = vcmask 130048
        %v246 = vsel %vm245, %v243, 0.0
        %v247 = vsel %vm245, %v244, 0.0
        %v248 = vadd.f32 %v246, %v247
        %249 = vadd.xlane.f32.xlu0 %v248
        %v250 = vpop.xlane.xlu0 %249
        %v251 = vrot.slane %v250, 4
        %v252 = vadd.f32 %v250, %v251
        %v253 = vrot.slane %v252, 2
        %v254 = vadd.f32 %v252, %v253
        %v255 = vrot.slane %v254, 1
        %v256 = vadd.f32 %v254, %v255
        %s257 = vtos %v256
        %v258 = vadd.f32 %v239, %v241
        %v259 = vadd.f32 %v240, %v242
        %v260 = vsel %vm245, %v258, 0.0
        %v261 = vsel %vm245, %v259, 0.0
        %v262 = vadd.f32 %v260, %v261
        %263 = vadd.xlane.f32.xlu0 %v262
        %v264 = vpop.xlane.xlu0 %263
        %v265 = vrot.slane %v264, 4
        %v266 = vadd.f32 %v264, %v265
        %v267 = vrot.slane %v266, 2
        %v268 = vadd.f32 %v266, %v267
        %v269 = vrot.slane %v268, 1
        %v270 = vadd.f32 %v268, %v269
        %s271 = vtos %v270
        %v272 = vsub.f32 1.0, %v239
        %v273 = vsub.f32 1.0, %v240
        %v274 = vsub.f32 1.0, %v241
        %v275 = vsub.f32 1.0, %v242
        %vm276 = vcmask 1047680
        %277 = vrot.lane.b32.xlu0 %v272, 16
        %v278 = vpop.permute.xlu0 %277
        %v279 = vsel %vm276, %v278, %v272
        %280 = vrot.lane.b32.xlu0 %v273, 16
        %v281 = vpop.permute.xlu0 %280
        %v282 = vsel %vm276, %v281, %v273
        %283 = vrot.lane.b32.xlu0 %v279, 16
        %v284 = vpop.permute.xlu0 %283
        %285 = vrot.lane.b32.xlu0 %v282, 16
        %v286 = vpop.permute.xlu0 %285
        %v287 = vsel %vm276, %v284, %v272
        %v288 = vsel %vm276, %v286, %v273
        %290 = vrot.lane.b32.xlu0 %v218, 1
        %v291 = vpop.permute.xlu0 %290
        %v293 = vadd.f32 %v287, %v291
        %v294 = vadd.f32 %v288, %v291
        %297 = vrot.lane.b32.xlu0 %v293, 127
        %v298 = vpop.permute.xlu0 %297
        %299 = vrot.lane.b32.xlu0 %v294, 127
        %v300 = vpop.permute.xlu0 %299
        %v303 = vmax.f32 %v272, %v298
        %v304 = vmax.f32 %v273, %v300
        %306 = vrot.lane.b32.xlu0 %v216, 15
        %v307 = vpop.permute.xlu0 %306
        %v309 = vadd.f32 %v287, %v307
        %v310 = vadd.f32 %v288, %v307
        %313 = vrot.lane.b32.xlu0 %v309, 113
        %v314 = vpop.permute.xlu0 %313
        %315 = vrot.lane.b32.xlu0 %v310, 113
        %v316 = vpop.permute.xlu0 %315
        %v319 = vmax.f32 %v303, %v314
        %v320 = vmax.f32 %v304, %v316
        %v321 = vrot.slane %v319, 1
        %v322 = vrot.slane %v320, 1
        %vm323 = vcmp.lt.s32.totalorder %v211, 7
        %v324 = vsel %vm323, %v321, %v322
        %v325 = vsel %vm323, %v322, %v321
        %v326 = vadd.f32 %v324, %v225
        %v327 = vadd.f32 %v325, %v226
        %v328 = vmax.f32 %v319, %v326
        %v329 = vmax.f32 %v320, %v327
        %v330 = vrot.slane %v319, 7
        %v331 = vrot.slane %v320, 7
        %vm332 = vcmp.lt.s32.totalorder %v211, 1
        %v333 = vsel %vm332, %v330, %v331
        %v334 = vsel %vm332, %v331, %v330
        %v335 = vadd.f32 %v334, %v221
        %v336 = vadd.f32 %v333, %v222
        %v337 = vmax.f32 %v328, %v335
        %v338 = vmax.f32 %v329, %v336
        %v339 = vsub.f32 %v337, %v272
        %v340 = vsub.f32 %v338, %v273
        %341 = vrot.lane.b32.xlu0 %v274, 16
        %v342 = vpop.permute.xlu0 %341
        %v343 = vsel %vm276, %v342, %v274
        %344 = vrot.lane.b32.xlu0 %v275, 16
        %v345 = vpop.permute.xlu0 %344
        %v346 = vsel %vm276, %v345, %v275
        %347 = vrot.lane.b32.xlu0 %v343, 16
        %v348 = vpop.permute.xlu0 %347
        %349 = vrot.lane.b32.xlu0 %v346, 16
        %v350 = vpop.permute.xlu0 %349
        %v351 = vsel %vm276, %v348, %v274
        %v352 = vsel %vm276, %v350, %v275
        %v353 = vadd.f32 %v351, %v291
        %v354 = vadd.f32 %v352, %v291
        %357 = vrot.lane.b32.xlu0 %v353, 127
        %v358 = vpop.permute.xlu0 %357
        %359 = vrot.lane.b32.xlu0 %v354, 127
        %v360 = vpop.permute.xlu0 %359
        %v363 = vmax.f32 %v274, %v358
        %v364 = vmax.f32 %v275, %v360
        %v365 = vadd.f32 %v351, %v307
        %v366 = vadd.f32 %v352, %v307
        %369 = vrot.lane.b32.xlu0 %v365, 113
        %v370 = vpop.permute.xlu0 %369
        %371 = vrot.lane.b32.xlu0 %v366, 113
        %v372 = vpop.permute.xlu0 %371
        %v375 = vmax.f32 %v363, %v370
        %v376 = vmax.f32 %v364, %v372
        %v377 = vrot.slane %v375, 1
        %v378 = vrot.slane %v376, 1
        %v379 = vsel %vm323, %v377, %v378
        %v380 = vsel %vm323, %v378, %v377
        %v381 = vadd.f32 %v379, %v225
        %v382 = vadd.f32 %v380, %v226
        %v383 = vmax.f32 %v375, %v381
        %v384 = vmax.f32 %v376, %v382
        %v385 = vrot.slane %v375, 7
        %v386 = vrot.slane %v376, 7
        %v387 = vsel %vm332, %v385, %v386
        %v388 = vsel %vm332, %v386, %v385
        %v389 = vadd.f32 %v388, %v221
        %v390 = vadd.f32 %v387, %v222
        %v391 = vmax.f32 %v383, %v389
        %v392 = vmax.f32 %v384, %v390
        %v393 = vsub.f32 %v391, %v274
        %v394 = vsub.f32 %v392, %v275
        %395 = vrot.lane.b32.xlu0 %v339, 16
        %v396 = vpop.permute.xlu0 %395
        %v397 = vsel %vm276, %v396, %v339
        %398 = vrot.lane.b32.xlu0 %v340, 16
        %v399 = vpop.permute.xlu0 %398
        %v400 = vsel %vm276, %v399, %v340
        %401 = vrot.lane.b32.xlu0 %v397, 16
        %v402 = vpop.permute.xlu0 %401
        %403 = vrot.lane.b32.xlu0 %v400, 16
        %v404 = vpop.permute.xlu0 %403
        %v405 = vsel %vm276, %v402, %v339
        %v406 = vsel %vm276, %v404, %v340
        %408 = vrot.lane.b32.xlu0 %v230, 2
        %v409 = vpop.permute.xlu0 %408
        %v411 = vadd.f32 %v405, %v409
        %v412 = vadd.f32 %v406, %v409
        %415 = vrot.lane.b32.xlu0 %v411, 126
        %v416 = vpop.permute.xlu0 %415
        %417 = vrot.lane.b32.xlu0 %v412, 126
        %v418 = vpop.permute.xlu0 %417
        %v421 = vmax.f32 %v339, %v416
        %v422 = vmax.f32 %v340, %v418
        %v423 = vadd.f32 %v405, %v291
        %v424 = vadd.f32 %v406, %v291
        %427 = vrot.lane.b32.xlu0 %v423, 127
        %v428 = vpop.permute.xlu0 %427
        %429 = vrot.lane.b32.xlu0 %v424, 127
        %v430 = vpop.permute.xlu0 %429
        %v433 = vmax.f32 %v421, %v428
        %v434 = vmax.f32 %v422, %v430
        %v435 = vadd.f32 %v405, %v307
        %v436 = vadd.f32 %v406, %v307
        %439 = vrot.lane.b32.xlu0 %v435, 113
        %v440 = vpop.permute.xlu0 %439
        %441 = vrot.lane.b32.xlu0 %v436, 113
        %v442 = vpop.permute.xlu0 %441
        %v445 = vmax.f32 %v433, %v440
        %v446 = vmax.f32 %v434, %v442
        %448 = vrot.lane.b32.xlu0 %v228, 14
        %v449 = vpop.permute.xlu0 %448
        %v451 = vadd.f32 %v405, %v449
        %v452 = vadd.f32 %v406, %v449
        %455 = vrot.lane.b32.xlu0 %v451, 114
        %v456 = vpop.permute.xlu0 %455
        %457 = vrot.lane.b32.xlu0 %v452, 114
        %v458 = vpop.permute.xlu0 %457
        %v461 = vmax.f32 %v445, %v456
        %v462 = vmax.f32 %v446, %v458
        %v463 = vrot.slane %v461, 2
        %v464 = vrot.slane %v462, 2
        %vm465 = vcmp.lt.s32.totalorder %v211, 6
        %v466 = vsel %vm465, %v463, %v464
        %v467 = vsel %vm465, %v464, %v463
        %v468 = vadd.f32 %v466, %v237
        %v469 = vadd.f32 %v467, %v238
        %v470 = vmax.f32 %v461, %v468
        %v471 = vmax.f32 %v462, %v469
        %v472 = vrot.slane %v461, 1
        %v473 = vrot.slane %v462, 1
        %v474 = vsel %vm323, %v472, %v473
        %v475 = vsel %vm323, %v473, %v472
        %v476 = vadd.f32 %v474, %v225
        %v477 = vadd.f32 %v475, %v226
        %v478 = vmax.f32 %v470, %v476
        %v479 = vmax.f32 %v471, %v477
        %v480 = vrot.slane %v461, 7
        %v481 = vrot.slane %v462, 7
        %v482 = vsel %vm332, %v480, %v481
        %v483 = vsel %vm332, %v481, %v480
        %v484 = vadd.f32 %v483, %v221
        %v485 = vadd.f32 %v482, %v222
        %v486 = vmax.f32 %v478, %v484
        %v487 = vmax.f32 %v479, %v485
        %v488 = vrot.slane %v461, 6
        %v489 = vrot.slane %v462, 6
        %vm490 = vcmp.lt.s32.totalorder %v211, 2
        %v491 = vsel %vm490, %v488, %v489
        %v492 = vsel %vm490, %v489, %v488
        %v493 = vadd.f32 %v492, %v233
        %v494 = vadd.f32 %v491, %v234
        %v495 = vmax.f32 %v486, %v493
        %v496 = vmax.f32 %v487, %v494
        %497 = vrot.lane.b32.xlu0 %v393, 16
        %v498 = vpop.permute.xlu0 %497
        %v499 = vsel %vm276, %v498, %v393
        %500 = vrot.lane.b32.xlu0 %v394, 16
        %v501 = vpop.permute.xlu0 %500
        %v502 = vsel %vm276, %v501, %v394
        %503 = vrot.lane.b32.xlu0 %v499, 16
        %v504 = vpop.permute.xlu0 %503
        %505 = vrot.lane.b32.xlu0 %v502, 16
        %v506 = vpop.permute.xlu0 %505
        %v507 = vsel %vm276, %v504, %v393
        %v508 = vsel %vm276, %v506, %v394
        %v509 = vadd.f32 %v507, %v409
        %v510 = vadd.f32 %v508, %v409
        %513 = vrot.lane.b32.xlu0 %v509, 126
        %v514 = vpop.permute.xlu0 %513
        %515 = vrot.lane.b32.xlu0 %v510, 126
        %v516 = vpop.permute.xlu0 %515
        %v519 = vmax.f32 %v393, %v514
        %v520 = vmax.f32 %v394, %v516
        %v521 = vadd.f32 %v507, %v291
        %v522 = vadd.f32 %v508, %v291
        %525 = vrot.lane.b32.xlu0 %v521, 127
        %v526 = vpop.permute.xlu0 %525
        %527 = vrot.lane.b32.xlu0 %v522, 127
        %v528 = vpop.permute.xlu0 %527
        %v531 = vmax.f32 %v519, %v526
        %v532 = vmax.f32 %v520, %v528
        %v533 = vadd.f32 %v507, %v307
        %v534 = vadd.f32 %v508, %v307
        %537 = vrot.lane.b32.xlu0 %v533, 113
        %v538 = vpop.permute.xlu0 %537
        %539 = vrot.lane.b32.xlu0 %v534, 113
        %v540 = vpop.permute.xlu0 %539
        %v543 = vmax.f32 %v531, %v538
        %v544 = vmax.f32 %v532, %v540
        %v545 = vadd.f32 %v507, %v449
        %v546 = vadd.f32 %v508, %v449
        %549 = vrot.lane.b32.xlu0 %v545, 114
        %v550 = vpop.permute.xlu0 %549
        %551 = vrot.lane.b32.xlu0 %v546, 114
        %v552 = vpop.permute.xlu0 %551
        %v555 = vmax.f32 %v543, %v550
        %v556 = vmax.f32 %v544, %v552
        %v557 = vrot.slane %v555, 2
        %v558 = vrot.slane %v556, 2
        %v559 = vsel %vm465, %v557, %v558
        %v560 = vsel %vm465, %v558, %v557
        %v561 = vadd.f32 %v559, %v237
        %v562 = vadd.f32 %v560, %v238
        %v563 = vmax.f32 %v555, %v561
        %v564 = vmax.f32 %v556, %v562
        %v565 = vrot.slane %v555, 1
        %v566 = vrot.slane %v556, 1
        %v567 = vsel %vm323, %v565, %v566
        %v568 = vsel %vm323, %v566, %v565
        %v569 = vadd.f32 %v567, %v225
        %v570 = vadd.f32 %v568, %v226
        %v571 = vmax.f32 %v563, %v569
        %v572 = vmax.f32 %v564, %v570
        %v573 = vrot.slane %v555, 7
        %v574 = vrot.slane %v556, 7
        %v575 = vsel %vm332, %v573, %v574
        %v576 = vsel %vm332, %v574, %v573
        %v577 = vadd.f32 %v576, %v221
        %v578 = vadd.f32 %v575, %v222
        %v579 = vmax.f32 %v571, %v577
        %v580 = vmax.f32 %v572, %v578
        %v581 = vrot.slane %v555, 6
        %v582 = vrot.slane %v556, 6
        %v583 = vsel %vm490, %v581, %v582
        %v584 = vsel %vm490, %v582, %v581
        %v585 = vadd.f32 %v584, %v233
        %v586 = vadd.f32 %v583, %v234
        %v587 = vmax.f32 %v579, %v585
        %v588 = vmax.f32 %v580, %v586
        %v589 = vmul.f32 %v339, %v587
        %v590 = vmul.f32 %v340, %v588
        %v591 = vsel %vm245, %v589, 0.0
        %v592 = vsel %vm245, %v590, 0.0
        %v593 = vadd.f32 %v591, %v592
        %594 = vadd.xlane.f32.xlu0 %v593
        %v595 = vpop.xlane.xlu0 %594
        %v596 = vrot.slane %v595, 4
        %v597 = vadd.f32 %v595, %v596
        %v598 = vrot.slane %v597, 2
        %v599 = vadd.f32 %v597, %v598
        %v600 = vrot.slane %v599, 1
        %v601 = vadd.f32 %v599, %v600
        %s602 = vtos %v601
        %v603 = vstv %s602
        %v604 = vsel %vm245, %v339, 0.0
        %v605 = vsel %vm245, %v340, 0.0
        %v606 = vadd.f32 %v604, %v605
        %607 = vadd.xlane.f32.xlu0 %v606
        %v608 = vpop.xlane.xlu0 %607
        %v609 = vrot.slane %v608, 4
        %v610 = vadd.f32 %v608, %v609
        %v611 = vrot.slane %v610, 2
        %v612 = vadd.f32 %v610, %v611
        %v613 = vrot.slane %v612, 1
        %v614 = vadd.f32 %v612, %v613
        %s615 = vtos %v614
        %v616 = vstv %s615
        %v617 = vadd.f32 %v616, 1e-07
        %v618 = vrcp.pop %v617
        %v619 = vmul.f32 %v617, %v618
        %v620 = vsub.f32 1.0, %v619
        %v621 = vmul.f32 %v618, %v620
        %v622 = vadd.f32 %v618, %v621
        %vm623 = vweird.f32 %v617
        %vm624 = vweird.f32 %v618
        %vm625 = vmor %vm623, %vm624
        %v626 = vsel %vm625, %v618, %v622
        %v627 = vand.u32 2147483647, %v617
        %vm628 = vcmp.eq.f32.partialorder %v627, 8.507059e+37
        %v629 = vand.u32 %v617, 2147483648
        %v630 = vor.u32 1.1754944e-38, %v629
        %v631 = vsel %vm628, %v630, %v626
        %v632 = vmul.f32 %v603, %v631
        %v633 = vmul.f32 %v495, %v393
        %v634 = vmul.f32 %v496, %v394
        %v635 = vsel %vm245, %v633, 0.0
        %v636 = vsel %vm245, %v634, 0.0
        %v637 = vadd.f32 %v635, %v636
        %638 = vadd.xlane.f32.xlu0 %v637
        %v639 = vpop.xlane.xlu0 %638
        %v640 = vrot.slane %v639, 4
        %v641 = vadd.f32 %v639, %v640
        %v642 = vrot.slane %v641, 2
        %v643 = vadd.f32 %v641, %v642
        %v644 = vrot.slane %v643, 1
        %v645 = vadd.f32 %v643, %v644
        %s646 = vtos %v645
        %v647 = vstv %s646
        %v648 = vsel %vm245, %v393, 0.0
        %v649 = vsel %vm245, %v394, 0.0
        %v650 = vadd.f32 %v648, %v649
        %651 = vadd.xlane.f32.xlu0 %v650
        %v652 = vpop.xlane.xlu0 %651
        %v653 = vrot.slane %v652, 4
        %v654 = vadd.f32 %v652, %v653
        %v655 = vrot.slane %v654, 2
        %v656 = vadd.f32 %v654, %v655
        %v657 = vrot.slane %v656, 1
        %v658 = vadd.f32 %v656, %v657
        %s659 = vtos %v658
        %v660 = vstv %s659
        %v661 = vadd.f32 %v660, 1e-07
        %v662 = vrcp.pop %v661
        %v663 = vmul.f32 %v661, %v662
        %v664 = vsub.f32 1.0, %v663
        %v665 = vmul.f32 %v662, %v664
        %v666 = vadd.f32 %v662, %v665
        %vm667 = vweird.f32 %v661
        %vm668 = vweird.f32 %v662
        %vm669 = vmor %vm667, %vm668
        %v670 = vsel %vm669, %v662, %v666
        %v671 = vand.u32 2147483647, %v661
        %vm672 = vcmp.eq.f32.partialorder %v671, 8.507059e+37
        %v673 = vand.u32 %v661, 2147483648
        %v674 = vor.u32 1.1754944e-38, %v673
        %v675 = vsel %vm672, %v674, %v670
        %v676 = vmul.f32 %v647, %v675
        %v677 = vmul.f32 %v632, 2.0
        %v678 = vmul.f32 %v677, %v676
        %v679 = vadd.f32 %v632, %v676
        %v680 = vadd.f32 %v679, 1e-07
        %v681 = vrcp.pop %v680
        %v682 = vmul.f32 %v680, %v681
        %v683 = vsub.f32 1.0, %v682
        %v684 = vmul.f32 %v681, %v683
        %v685 = vadd.f32 %v681, %v684
        %vm686 = vweird.f32 %v680
        %vm687 = vweird.f32 %v681
        %vm688 = vmor %vm686, %vm687
        %v689 = vsel %vm688, %v681, %v685
        %v690 = vand.u32 2147483647, %v680
        %vm691 = vcmp.eq.f32.partialorder %v690, 8.507059e+37
        %v692 = vand.u32 %v680, 2147483648
        %v693 = vor.u32 1.1754944e-38, %v692
        %v694 = vsel %vm691, %v693, %v689
        %v695 = vmul.f32 %v678, %v694
        %v696 = vstv %s257
        %vm697 = vcmask 0
        %698 = vst.msk [vmem:[%s209] sm:$0x1] %vm697, %v696
        %v699 = vstv %s271
        %vm700 = vcmask 8200
        %701 = vst.msk [vmem:[%s209] sm:$0x1] %vm700, %v699
        %v702 = vsub.f32 1.0, %v695
        %vm703 = vcmask 16400
        %704 = vst.msk [vmem:[%s209] sm:$0x1] %vm703, %v702
        %s705 = scalar_lea.vmem %s168, 16 [#allocation2]
        %v706 = vld [vmem:[%s705] sm:$0xff]
        %v707 = vld [vmem:[%s705 + $0x8] sm:$0xff]
        %s708 = scalar_lea.vmem %s178, 16 [#allocation4]
        %v709 = vld [vmem:[%s708] sm:$0xff]
        %v710 = vld [vmem:[%s708 + $0x8] sm:$0xff]
        %v711 = vmul.f32 %v706, %v709
        %v712 = vmul.f32 %v707, %v710
        %v713 = vsel %vm245, %v711, 0.0
        %v714 = vsel %vm245, %v712, 0.0
        %v715 = vadd.f32 %v713, %v714
        %716 = vadd.xlane.f32.xlu0 %v715
        %v717 = vpop.xlane.xlu0 %716
        %v718 = vrot.slane %v717, 4
        %v719 = vadd.f32 %v717, %v718
        %v720 = vrot.slane %v719, 2
        %v721 = vadd.f32 %v719, %v720
        %v722 = vrot.slane %v721, 1
        %v723 = vadd.f32 %v721, %v722
        %s724 = vtos %v723
        %v725 = vadd.f32 %v706, %v709
        %v726 = vadd.f32 %v707, %v710
        %v727 = vsel %vm245, %v725, 0.0
        %v728 = vsel %vm245, %v726, 0.0
        %v729 = vadd.f32 %v727, %v728
        %730 = vadd.xlane.f32.xlu0 %v729
        %v731 = vpop.xlane.xlu0 %730
        %v732 = vrot.slane %v731, 4
        %v733 = vadd.f32 %v731, %v732
        %v734 = vrot.slane %v733, 2
        %v735 = vadd.f32 %v733, %v734
        %v736 = vrot.slane %v735, 1
        %v737 = vadd.f32 %v735, %v736
        %s738 = vtos %v737
        %v739 = vsub.f32 1.0, %v706
        %v740 = vsub.f32 1.0, %v707
        %v741 = vsub.f32 1.0, %v709
        %v742 = vsub.f32 1.0, %v710
        %743 = vrot.lane.b32.xlu0 %v739, 16
        %v744 = vpop.permute.xlu0 %743
        %v745 = vsel %vm276, %v744, %v739
        %746 = vrot.lane.b32.xlu0 %v740, 16
        %v747 = vpop.permute.xlu0 %746
        %v748 = vsel %vm276, %v747, %v740
        %749 = vrot.lane.b32.xlu0 %v745, 16
        %v750 = vpop.permute.xlu0 %749
        %751 = vrot.lane.b32.xlu0 %v748, 16
        %v752 = vpop.permute.xlu0 %751
        %v753 = vsel %vm276, %v750, %v739
        %v754 = vsel %vm276, %v752, %v740
        %v755 = vadd.f32 %v753, %v291
        %v756 = vadd.f32 %v754, %v291
        %759 = vrot.lane.b32.xlu0 %v755, 127
        %v760 = vpop.permute.xlu0 %759
        %761 = vrot.lane.b32.xlu0 %v756, 127
        %v762 = vpop.permute.xlu0 %761
        %v765 = vmax.f32 %v739, %v760
        %v766 = vmax.f32 %v740, %v762
        %v767 = vadd.f32 %v753, %v307
        %v768 = vadd.f32 %v754, %v307
        %771 = vrot.lane.b32.xlu0 %v767, 113
        %v772 = vpop.permute.xlu0 %771
        %773 = vrot.lane.b32.xlu0 %v768, 113
        %v774 = vpop.permute.xlu0 %773
        %v777 = vmax.f32 %v765, %v772
        %v778 = vmax.f32 %v766, %v774
        %v779 = vrot.slane %v777, 1
        %v780 = vrot.slane %v778, 1
        %v781 = vsel %vm323, %v779, %v780
        %v782 = vsel %vm323, %v780, %v779
        %v783 = vadd.f32 %v781, %v225
        %v784 = vadd.f32 %v782, %v226
        %v785 = vmax.f32 %v777, %v783
        %v786 = vmax.f32 %v778, %v784
        %v787 = vrot.slane %v777, 7
        %v788 = vrot.slane %v778, 7
        %v789 = vsel %vm332, %v787, %v788
        %v790 = vsel %vm332, %v788, %v787
        %v791 = vadd.f32 %v790, %v221
        %v792 = vadd.f32 %v789, %v222
        %v793 = vmax.f32 %v785, %v791
        %v794 = vmax.f32 %v786, %v792
        %v795 = vsub.f32 %v793, %v739
        %v796 = vsub.f32 %v794, %v740
        %797 = vrot.lane.b32.xlu0 %v741, 16
        %v798 = vpop.permute.xlu0 %797
        %v799 = vsel %vm276, %v798, %v741
        %800 = vrot.lane.b32.xlu0 %v742, 16
        %v801 = vpop.permute.xlu0 %800
        %v802 = vsel %vm276, %v801, %v742
        %803 = vrot.lane.b32.xlu0 %v799, 16
        %v804 = vpop.permute.xlu0 %803
        %805 = vrot.lane.b32.xlu0 %v802, 16
        %v806 = vpop.permute.xlu0 %805
        %v807 = vsel %vm276, %v804, %v741
        %v808 = vsel %vm276, %v806, %v742
        %v809 = vadd.f32 %v807, %v291
        %v810 = vadd.f32 %v808, %v291
        %813 = vrot.lane.b32.xlu0 %v809, 127
        %v814 = vpop.permute.xlu0 %813
        %815 = vrot.lane.b32.xlu0 %v810, 127
        %v816 = vpop.permute.xlu0 %815
        %v819 = vmax.f32 %v741, %v814
        %v820 = vmax.f32 %v742, %v816
        %v821 = vadd.f32 %v807, %v307
        %v822 = vadd.f32 %v808, %v307
        %825 = vrot.lane.b32.xlu0 %v821, 113
        %v826 = vpop.permute.xlu0 %825
        %827 = vrot.lane.b32.xlu0 %v822, 113
        %v828 = vpop.permute.xlu0 %827
        %v831 = vmax.f32 %v819, %v826
        %v832 = vmax.f32 %v820, %v828
        %v833 = vrot.slane %v831, 1
        %v834 = vrot.slane %v832, 1
        %v835 = vsel %vm323, %v833, %v834
        %v836 = vsel %vm323, %v834, %v833
        %v837 = vadd.f32 %v835, %v225
        %v838 = vadd.f32 %v836, %v226
        %v839 = vmax.f32 %v831, %v837
        %v840 = vmax.f32 %v832, %v838
        %v841 = vrot.slane %v831, 7
        %v842 = vrot.slane %v832, 7
        %v843 = vsel %vm332, %v841, %v842
        %v844 = vsel %vm332, %v842, %v841
        %v845 = vadd.f32 %v844, %v221
        %v846 = vadd.f32 %v843, %v222
        %v847 = vmax.f32 %v839, %v845
        %v848 = vmax.f32 %v840, %v846
        %v849 = vsub.f32 %v847, %v741
        %v850 = vsub.f32 %v848, %v742
        %851 = vrot.lane.b32.xlu0 %v795, 16
        %v852 = vpop.permute.xlu0 %851
        %v853 = vsel %vm276, %v852, %v795
        %854 = vrot.lane.b32.xlu0 %v796, 16
        %v855 = vpop.permute.xlu0 %854
        %v856 = vsel %vm276, %v855, %v796
        %857 = vrot.lane.b32.xlu0 %v853, 16
        %v858 = vpop.permute.xlu0 %857
        %859 = vrot.lane.b32.xlu0 %v856, 16
        %v860 = vpop.permute.xlu0 %859
        %v861 = vsel %vm276, %v858, %v795
        %v862 = vsel %vm276, %v860, %v796
        %v863 = vadd.f32 %v861, %v409
        %v864 = vadd.f32 %v862, %v409
        %867 = vrot.lane.b32.xlu0 %v863, 126
        %v868 = vpop.permute.xlu0 %867
        %869 = vrot.lane.b32.xlu0 %v864, 126
        %v870 = vpop.permute.xlu0 %869
        %v873 = vmax.f32 %v795, %v868
        %v874 = vmax.f32 %v796, %v870
        %v875 = vadd.f32 %v861, %v291
        %v876 = vadd.f32 %v862, %v291
        %879 = vrot.lane.b32.xlu0 %v875, 127
        %v880 = vpop.permute.xlu0 %879
        %881 = vrot.lane.b32.xlu0 %v876, 127
        %v882 = vpop.permute.xlu0 %881
        %v885 = vmax.f32 %v873, %v880
        %v886 = vmax.f32 %v874, %v882
        %v887 = vadd.f32 %v861, %v307
        %v888 = vadd.f32 %v862, %v307
        %891 = vrot.lane.b32.xlu0 %v887, 113
        %v892 = vpop.permute.xlu0 %891
        %893 = vrot.lane.b32.xlu0 %v888, 113
        %v894 = vpop.permute.xlu0 %893
        %v897 = vmax.f32 %v885, %v892
        %v898 = vmax.f32 %v886, %v894
        %v899 = vadd.f32 %v861, %v449
        %v900 = vadd.f32 %v862, %v449
        %903 = vrot.lane.b32.xlu0 %v899, 114
        %v904 = vpop.permute.xlu0 %903
        %905 = vrot.lane.b32.xlu0 %v900, 114
        %v906 = vpop.permute.xlu0 %905
        %v909 = vmax.f32 %v897, %v904
        %v910 = vmax.f32 %v898, %v906
        %v911 = vrot.slane %v909, 2
        %v912 = vrot.slane %v910, 2
        %v913 = vsel %vm465, %v911, %v912
        %v914 = vsel %vm465, %v912, %v911
        %v915 = vadd.f32 %v913, %v237
        %v916 = vadd.f32 %v914, %v238
        %v917 = vmax.f32 %v909, %v915
        %v918 = vmax.f32 %v910, %v916
        %v919 = vrot.slane %v909, 1
        %v920 = vrot.slane %v910, 1
        %v921 = vsel %vm323, %v919, %v920
        %v922 = vsel %vm323, %v920, %v919
        %v923 = vadd.f32 %v921, %v225
        %v924 = vadd.f32 %v922, %v226
        %v925 = vmax.f32 %v917, %v923
        %v926 = vmax.f32 %v918, %v924
        %v927 = vrot.slane %v909, 7
        %v928 = vrot.slane %v910, 7
        %v929 = vsel %vm332, %v927, %v928
        %v930 = vsel %vm332, %v928, %v927
        %v931 = vadd.f32 %v930, %v221
        %v932 = vadd.f32 %v929, %v222
        %v933 = vmax.f32 %v925, %v931
        %v934 = vmax.f32 %v926, %v932
        %v935 = vrot.slane %v909, 6
        %v936 = vrot.slane %v910, 6
        %v937 = vsel %vm490, %v935, %v936
        %v938 = vsel %vm490, %v936, %v935
        %v939 = vadd.f32 %v938, %v233
        %v940 = vadd.f32 %v937, %v234
        %v941 = vmax.f32 %v933, %v939
        %v942 = vmax.f32 %v934, %v940
        %943 = vrot.lane.b32.xlu0 %v849, 16
        %v944 = vpop.permute.xlu0 %943
        %v945 = vsel %vm276, %v944, %v849
        %946 = vrot.lane.b32.xlu0 %v850, 16
        %v947 = vpop.permute.xlu0 %946
        %v948 = vsel %vm276, %v947, %v850
        %949 = vrot.lane.b32.xlu0 %v945, 16
        %v950 = vpop.permute.xlu0 %949
        %951 = vrot.lane.b32.xlu0 %v948, 16
        %v952 = vpop.permute.xlu0 %951
        %v953 = vsel %vm276, %v950, %v849
        %v954 = vsel %vm276, %v952, %v850
        %v955 = vadd.f32 %v953, %v409
        %v956 = vadd.f32 %v954, %v409
        %959 = vrot.lane.b32.xlu0 %v955, 126
        %v960 = vpop.permute.xlu0 %959
        %961 = vrot.lane.b32.xlu0 %v956, 126
        %v962 = vpop.permute.xlu0 %961
        %v965 = vmax.f32 %v849, %v960
        %v966 = vmax.f32 %v850, %v962
        %v967 = vadd.f32 %v953, %v291
        %v968 = vadd.f32 %v954, %v291
        %971 = vrot.lane.b32.xlu0 %v967, 127
        %v972 = vpop.permute.xlu0 %971
        %973 = vrot.lane.b32.xlu0 %v968, 127
        %v974 = vpop.permute.xlu0 %973
        %v977 = vmax.f32 %v965, %v972
        %v978 = vmax.f32 %v966, %v974
        %v979 = vadd.f32 %v953, %v307
        %v980 = vadd.f32 %v954, %v307
        %983 = vrot.lane.b32.xlu0 %v979, 113
        %v984 = vpop.permute.xlu0 %983
        %985 = vrot.lane.b32.xlu0 %v980, 113
        %v986 = vpop.permute.xlu0 %985
        %v989 = vmax.f32 %v977, %v984
        %v990 = vmax.f32 %v978, %v986
        %v991 = vadd.f32 %v953, %v449
        %v992 = vadd.f32 %v954, %v449
        %995 = vrot.lane.b32.xlu0 %v991, 114
        %v996 = vpop.permute.xlu0 %995
        %997 = vrot.lane.b32.xlu0 %v992, 114
        %v998 = vpop.permute.xlu0 %997
        %v1001 = vmax.f32 %v989, %v996
        %v1002 = vmax.f32 %v990, %v998
        %v1003 = vrot.slane %v1001, 2
        %v1004 = vrot.slane %v1002, 2
        %v1005 = vsel %vm465, %v1003, %v1004
        %v1006 = vsel %vm465, %v1004, %v1003
        %v1007 = vadd.f32 %v1005, %v237
        %v1008 = vadd.f32 %v1006, %v238
        %v1009 = vmax.f32 %v1001, %v1007
        %v1010 = vmax.f32 %v1002, %v1008
        %v1011 = vrot.slane %v1001, 1
        %v1012 = vrot.slane %v1002, 1
        %v1013 = vsel %vm323, %v1011, %v1012
        %v1014 = vsel %vm323, %v1012, %v1011
        %v1015 = vadd.f32 %v1013, %v225
        %v1016 = vadd.f32 %v1014, %v226
        %v1017 = vmax.f32 %v1009, %v1015
        %v1018 = vmax.f32 %v1010, %v1016
        %v1019 = vrot.slane %v1001, 7
        %v1020 = vrot.slane %v1002, 7
        %v1021 = vsel %vm332, %v1019, %v1020
        %v1022 = vsel %vm332, %v1020, %v1019
        %v1023 = vadd.f32 %v1022, %v221
        %v1024 = vadd.f32 %v1021, %v222
        %v1025 = vmax.f32 %v1017, %v1023
        %v1026 = vmax.f32 %v1018, %v1024
        %v1027 = vrot.slane %v1001, 6
        %v1028 = vrot.slane %v1002, 6
        %v1029 = vsel %vm490, %v1027, %v1028
        %v1030 = vsel %vm490, %v1028, %v1027
        %v1031 = vadd.f32 %v1030, %v233
        %v1032 = vadd.f32 %v1029, %v234
        %v1033 = vmax.f32 %v1025, %v1031
        %v1034 = vmax.f32 %v1026, %v1032
        %v1035 = vmul.f32 %v795, %v1033
        %v1036 = vmul.f32 %v796, %v1034
        %v1037 = vsel %vm245, %v1035, 0.0
        %v1038 = vsel %vm245, %v1036, 0.0
        %v1039 = vadd.f32 %v1037, %v1038
        %1040 = vadd.xlane.f32.xlu0 %v1039
        %v1041 = vpop.xlane.xlu0 %1040
        %v1042 = vrot.slane %v1041, 4
        %v1043 = vadd.f32 %v1041, %v1042
        %v1044 = vrot.slane %v1043, 2
        %v1045 = vadd.f32 %v1043, %v1044
        %v1046 = vrot.slane %v1045, 1
        %v1047 = vadd.f32 %v1045, %v1046
        %s1048 = vtos %v1047
        %v1049 = vstv %s1048
        %v1050 = vsel %vm245, %v795, 0.0
        %v1051 = vsel %vm245, %v796, 0.0
        %v1052 = vadd.f32 %v1050, %v1051
        %1053 = vadd.xlane.f32.xlu0 %v1052
        %v1054 = vpop.xlane.xlu0 %1053
        %v1055 = vrot.slane %v1054, 4
        %v1056 = vadd.f32 %v1054, %v1055
        %v1057 = vrot.slane %v1056, 2
        %v1058 = vadd.f32 %v1056, %v1057
        %v1059 = vrot.slane %v1058, 1
        %v1060 = vadd.f32 %v1058, %v1059
        %s1061 = vtos %v1060
        %v1062 = vstv %s1061
        %v1063 = vadd.f32 %v1062, 1e-07
        %v1064 = vrcp.pop %v1063
        %v1065 = vmul.f32 %v1063, %v1064
        %v1066 = vsub.f32 1.0, %v1065
        %v1067 = vmul.f32 %v1064, %v1066
        %v1068 = vadd.f32 %v1064, %v1067
        %vm1069 = vweird.f32 %v1063
        %vm1070 = vweird.f32 %v1064
        %vm1071 = vmor %vm1069, %vm1070
        %v1072 = vsel %vm1071, %v1064, %v1068
        %v1073 = vand.u32 2147483647, %v1063
        %vm1074 = vcmp.eq.f32.partialorder %v1073, 8.507059e+37
        %v1075 = vand.u32 %v1063, 2147483648
        %v1076 = vor.u32 1.1754944e-38, %v1075
        %v1077 = vsel %vm1074, %v1076, %v1072
        %v1078 = vmul.f32 %v1049, %v1077
        %v1079 = vmul.f32 %v941, %v849
        %v1080 = vmul.f32 %v942, %v850
        %v1081 = vsel %vm245, %v1079, 0.0
        %v1082 = vsel %vm245, %v1080, 0.0
        %v1083 = vadd.f32 %v1081, %v1082
        %1084 = vadd.xlane.f32.xlu0 %v1083
        %v1085 = vpop.xlane.xlu0 %1084
        %v1086 = vrot.slane %v1085, 4
        %v1087 = vadd.f32 %v1085, %v1086
        %v1088 = vrot.slane %v1087, 2
        %v1089 = vadd.f32 %v1087, %v1088
        %v1090 = vrot.slane %v1089, 1
        %v1091 = vadd.f32 %v1089, %v1090
        %s1092 = vtos %v1091
        %v1093 = vstv %s1092
        %v1094 = vsel %vm245, %v849, 0.0
        %v1095 = vsel %vm245, %v850, 0.0
        %v1096 = vadd.f32 %v1094, %v1095
        %1097 = vadd.xlane.f32.xlu0 %v1096
        %v1098 = vpop.xlane.xlu0 %1097
        %v1099 = vrot.slane %v1098, 4
        %v1100 = vadd.f32 %v1098, %v1099
        %v1101 = vrot.slane %v1100, 2
        %v1102 = vadd.f32 %v1100, %v1101
        %v1103 = vrot.slane %v1102, 1
        %v1104 = vadd.f32 %v1102, %v1103
        %s1105 = vtos %v1104
        %v1106 = vstv %s1105
        %v1107 = vadd.f32 %v1106, 1e-07
        %v1108 = vrcp.pop %v1107
        %v1109 = vmul.f32 %v1107, %v1108
        %v1110 = vsub.f32 1.0, %v1109
        %v1111 = vmul.f32 %v1108, %v1110
        %v1112 = vadd.f32 %v1108, %v1111
        %vm1113 = vweird.f32 %v1107
        %vm1114 = vweird.f32 %v1108
        %vm1115 = vmor %vm1113, %vm1114
        %v1116 = vsel %vm1115, %v1108, %v1112
        %v1117 = vand.u32 2147483647, %v1107
        %vm1118 = vcmp.eq.f32.partialorder %v1117, 8.507059e+37
        %v1119 = vand.u32 %v1107, 2147483648
        %v1120 = vor.u32 1.1754944e-38, %v1119
        %v1121 = vsel %vm1118, %v1120, %v1116
        %v1122 = vmul.f32 %v1093, %v1121
        %v1123 = vmul.f32 %v1078, 2.0
        %v1124 = vmul.f32 %v1123, %v1122
        %v1125 = vadd.f32 %v1078, %v1122
        %v1126 = vadd.f32 %v1125, 1e-07
        %v1127 = vrcp.pop %v1126
        %v1128 = vmul.f32 %v1126, %v1127
        %v1129 = vsub.f32 1.0, %v1128
        %v1130 = vmul.f32 %v1127, %v1129
        %v1131 = vadd.f32 %v1127, %v1130
        %vm1132 = vweird.f32 %v1126
        %vm1133 = vweird.f32 %v1127
        %vm1134 = vmor %vm1132, %vm1133
        %v1135 = vsel %vm1134, %v1127, %v1131
        %v1136 = vand.u32 2147483647, %v1126
        %vm1137 = vcmp.eq.f32.partialorder %v1136, 8.507059e+37
        %v1138 = vand.u32 %v1126, 2147483648
        %v1139 = vor.u32 1.1754944e-38, %v1138
        %v1140 = vsel %vm1137, %v1139, %v1135
        %v1141 = vmul.f32 %v1124, %v1140
        %v1142 = vstv %s724
        %1143 = vst.msk [vmem:[%s209 + $0x1] sm:$0x1] %vm697, %v1142
        %v1144 = vstv %s738
        %1145 = vst.msk [vmem:[%s209 + $0x1] sm:$0x1] %vm700, %v1144
        %v1146 = vsub.f32 1.0, %v1141
        %1147 = vst.msk [vmem:[%s209 + $0x1] sm:$0x1] %vm703, %v1146
        %s1148 = scalar_lea.vmem %s168, 32 [#allocation2]
        %v1149 = vld [vmem:[%s1148] sm:$0xff]
        %v1150 = vld [vmem:[%s1148 + $0x8] sm:$0xff]
        %s1151 = scalar_lea.vmem %s178, 32 [#allocation4]
        %v1152 = vld [vmem:[%s1151] sm:$0xff]
        %v1153 = vld [vmem:[%s1151 + $0x8] sm:$0xff]
        %v1154 = vmul.f32 %v1149, %v1152
        %v1155 = vmul.f32 %v1150, %v1153
        %v1156 = vsel %vm245, %v1154, 0.0
        %v1157 = vsel %vm245, %v1155, 0.0
        %v1158 = vadd.f32 %v1156, %v1157
        %1159 = vadd.xlane.f32.xlu0 %v1158
        %v1160 = vpop.xlane.xlu0 %1159
        %v1161 = vrot.slane %v1160, 4
        %v1162 = vadd.f32 %v1160, %v1161
        %v1163 = vrot.slane %v1162, 2
        %v1164 = vadd.f32 %v1162, %v1163
        %v1165 = vrot.slane %v1164, 1
        %v1166 = vadd.f32 %v1164, %v1165
        %s1167 = vtos %v1166
        %v1168 = vadd.f32 %v1149, %v1152
        %v1169 = vadd.f32 %v1150, %v1153
        %v1170 = vsel %vm245, %v1168, 0.0
        %v1171 = vsel %vm245, %v1169, 0.0
        %v1172 = vadd.f32 %v1170, %v1171
        %1173 = vadd.xlane.f32.xlu0 %v1172
        %v1174 = vpop.xlane.xlu0 %1173
        %v1175 = vrot.slane %v1174, 4
        %v1176 = vadd.f32 %v1174, %v1175
        %v1177 = vrot.slane %v1176, 2
        %v1178 = vadd.f32 %v1176, %v1177
        %v1179 = vrot.slane %v1178, 1
        %v1180 = vadd.f32 %v1178, %v1179
        %s1181 = vtos %v1180
        %v1182 = vsub.f32 1.0, %v1149
        %v1183 = vsub.f32 1.0, %v1150
        %v1184 = vsub.f32 1.0, %v1152
        %v1185 = vsub.f32 1.0, %v1153
        %1186 = vrot.lane.b32.xlu0 %v1182, 16
        %v1187 = vpop.permute.xlu0 %1186
        %v1188 = vsel %vm276, %v1187, %v1182
        %1189 = vrot.lane.b32.xlu0 %v1183, 16
        %v1190 = vpop.permute.xlu0 %1189
        %v1191 = vsel %vm276, %v1190, %v1183
        %1192 = vrot.lane.b32.xlu0 %v1188, 16
        %v1193 = vpop.permute.xlu0 %1192
        %1194 = vrot.lane.b32.xlu0 %v1191, 16
        %v1195 = vpop.permute.xlu0 %1194
        %v1196 = vsel %vm276, %v1193, %v1182
        %v1197 = vsel %vm276, %v1195, %v1183
        %v1198 = vadd.f32 %v1196, %v291
        %v1199 = vadd.f32 %v1197, %v291
        %1202 = vrot.lane.b32.xlu0 %v1198, 127
        %v1203 = vpop.permute.xlu0 %1202
        %1204 = vrot.lane.b32.xlu0 %v1199, 127
        %v1205 = vpop.permute.xlu0 %1204
        %v1208 = vmax.f32 %v1182, %v1203
        %v1209 = vmax.f32 %v1183, %v1205
        %v1210 = vadd.f32 %v1196, %v307
        %v1211 = vadd.f32 %v1197, %v307
        %1214 = vrot.lane.b32.xlu0 %v1210, 113
        %v1215 = vpop.permute.xlu0 %1214
        %1216 = vrot.lane.b32.xlu0 %v1211, 113
        %v1217 = vpop.permute.xlu0 %1216
        %v1220 = vmax.f32 %v1208, %v1215
        %v1221 = vmax.f32 %v1209, %v1217
        %v1222 = vrot.slane %v1220, 1
        %v1223 = vrot.slane %v1221, 1
        %v1224 = vsel %vm323, %v1222, %v1223
        %v1225 = vsel %vm323, %v1223, %v1222
        %v1226 = vadd.f32 %v1224, %v225
        %v1227 = vadd.f32 %v1225, %v226
        %v1228 = vmax.f32 %v1220, %v1226
        %v1229 = vmax.f32 %v1221, %v1227
        %v1230 = vrot.slane %v1220, 7
        %v1231 = vrot.slane %v1221, 7
        %v1232 = vsel %vm332, %v1230, %v1231
        %v1233 = vsel %vm332, %v1231, %v1230
        %v1234 = vadd.f32 %v1233, %v221
        %v1235 = vadd.f32 %v1232, %v222
        %v1236 = vmax.f32 %v1228, %v1234
        %v1237 = vmax.f32 %v1229, %v1235
        %v1238 = vsub.f32 %v1236, %v1182
        %v1239 = vsub.f32 %v1237, %v1183
        %1240 = vrot.lane.b32.xlu0 %v1184, 16
        %v1241 = vpop.permute.xlu0 %1240
        %v1242 = vsel %vm276, %v1241, %v1184
        %1243 = vrot.lane.b32.xlu0 %v1185, 16
        %v1244 = vpop.permute.xlu0 %1243
        %v1245 = vsel %vm276, %v1244, %v1185
        %1246 = vrot.lane.b32.xlu0 %v1242, 16
        %v1247 = vpop.permute.xlu0 %1246
        %1248 = vrot.lane.b32.xlu0 %v1245, 16
        %v1249 = vpop.permute.xlu0 %1248
        %v1250 = vsel %vm276, %v1247, %v1184
        %v1251 = vsel %vm276, %v1249, %v1185
        %v1252 = vadd.f32 %v1250, %v291
        %v1253 = vadd.f32 %v1251, %v291
        %1256 = vrot.lane.b32.xlu0 %v1252, 127
        %v1257 = vpop.permute.xlu0 %1256
        %1258 = vrot.lane.b32.xlu0 %v1253, 127
        %v1259 = vpop.permute.xlu0 %1258
        %v1262 = vmax.f32 %v1184, %v1257
        %v1263 = vmax.f32 %v1185, %v1259
        %v1264 = vadd.f32 %v1250, %v307
        %v1265 = vadd.f32 %v1251, %v307
        %1268 = vrot.lane.b32.xlu0 %v1264, 113
        %v1269 = vpop.permute.xlu0 %1268
        %1270 = vrot.lane.b32.xlu0 %v1265, 113
        %v1271 = vpop.permute.xlu0 %1270
        %v1274 = vmax.f32 %v1262, %v1269
        %v1275 = vmax.f32 %v1263, %v1271
        %v1276 = vrot.slane %v1274, 1
        %v1277 = vrot.slane %v1275, 1
        %v1278 = vsel %vm323, %v1276, %v1277
        %v1279 = vsel %vm323, %v1277, %v1276
        %v1280 = vadd.f32 %v1278, %v225
        %v1281 = vadd.f32 %v1279, %v226
        %v1282 = vmax.f32 %v1274, %v1280
        %v1283 = vmax.f32 %v1275, %v1281
        %v1284 = vrot.slane %v1274, 7
        %v1285 = vrot.slane %v1275, 7
        %v1286 = vsel %vm332, %v1284, %v1285
        %v1287 = vsel %vm332, %v1285, %v1284
        %v1288 = vadd.f32 %v1287, %v221
        %v1289 = vadd.f32 %v1286, %v222
        %v1290 = vmax.f32 %v1282, %v1288
        %v1291 = vmax.f32 %v1283, %v1289
        %v1292 = vsub.f32 %v1290, %v1184
        %v1293 = vsub.f32 %v1291, %v1185
        %1294 = vrot.lane.b32.xlu0 %v1238, 16
        %v1295 = vpop.permute.xlu0 %1294
        %v1296 = vsel %vm276, %v1295, %v1238
        %1297 = vrot.lane.b32.xlu0 %v1239, 16
        %v1298 = vpop.permute.xlu0 %1297
        %v1299 = vsel %vm276, %v1298, %v1239
        %1300 = vrot.lane.b32.xlu0 %v1296, 16
        %v1301 = vpop.permute.xlu0 %1300
        %1302 = vrot.lane.b32.xlu0 %v1299, 16
        %v1303 = vpop.permute.xlu0 %1302
        %v1304 = vsel %vm276, %v1301, %v1238
        %v1305 = vsel %vm276, %v1303, %v1239
        %v1306 = vadd.f32 %v1304, %v409
        %v1307 = vadd.f32 %v1305, %v409
        %1310 = vrot.lane.b32.xlu0 %v1306, 126
        %v1311 = vpop.permute.xlu0 %1310
        %1312 = vrot.lane.b32.xlu0 %v1307, 126
        %v1313 = vpop.permute.xlu0 %1312
        %v1316 = vmax.f32 %v1238, %v1311
        %v1317 = vmax.f32 %v1239, %v1313
        %v1318 = vadd.f32 %v1304, %v291
        %v1319 = vadd.f32 %v1305, %v291
        %1322 = vrot.lane.b32.xlu0 %v1318, 127
        %v1323 = vpop.permute.xlu0 %1322
        %1324 = vrot.lane.b32.xlu0 %v1319, 127
        %v1325 = vpop.permute.xlu0 %1324
        %v1328 = vmax.f32 %v1316, %v1323
        %v1329 = vmax.f32 %v1317, %v1325
        %v1330 = vadd.f32 %v1304, %v307
        %v1331 = vadd.f32 %v1305, %v307
        %1334 = vrot.lane.b32.xlu0 %v1330, 113
        %v1335 = vpop.permute.xlu0 %1334
        %1336 = vrot.lane.b32.xlu0 %v1331, 113
        %v1337 = vpop.permute.xlu0 %1336
        %v1340 = vmax.f32 %v1328, %v1335
        %v1341 = vmax.f32 %v1329, %v1337
        %v1342 = vadd.f32 %v1304, %v449
        %v1343 = vadd.f32 %v1305, %v449
        %1346 = vrot.lane.b32.xlu0 %v1342, 114
        %v1347 = vpop.permute.xlu0 %1346
        %1348 = vrot.lane.b32.xlu0 %v1343, 114
        %v1349 = vpop.permute.xlu0 %1348
        %v1352 = vmax.f32 %v1340, %v1347
        %v1353 = vmax.f32 %v1341, %v1349
        %v1354 = vrot.slane %v1352, 2
        %v1355 = vrot.slane %v1353, 2
        %v1356 = vsel %vm465, %v1354, %v1355
        %v1357 = vsel %vm465, %v1355, %v1354
        %v1358 = vadd.f32 %v1356, %v237
        %v1359 = vadd.f32 %v1357, %v238
        %v1360 = vmax.f32 %v1352, %v1358
        %v1361 = vmax.f32 %v1353, %v1359
        %v1362 = vrot.slane %v1352, 1
        %v1363 = vrot.slane %v1353, 1
        %v1364 = vsel %vm323, %v1362, %v1363
        %v1365 = vsel %vm323, %v1363, %v1362
        %v1366 = vadd.f32 %v1364, %v225
        %v1367 = vadd.f32 %v1365, %v226
        %v1368 = vmax.f32 %v1360, %v1366
        %v1369 = vmax.f32 %v1361, %v1367
        %v1370 = vrot.slane %v1352, 7
        %v1371 = vrot.slane %v1353, 7
        %v1372 = vsel %vm332, %v1370, %v1371
        %v1373 = vsel %vm332, %v1371, %v1370
        %v1374 = vadd.f32 %v1373, %v221
        %v1375 = vadd.f32 %v1372, %v222
        %v1376 = vmax.f32 %v1368, %v1374
        %v1377 = vmax.f32 %v1369, %v1375
        %v1378 = vrot.slane %v1352, 6
        %v1379 = vrot.slane %v1353, 6
        %v1380 = vsel %vm490, %v1378, %v1379
        %v1381 = vsel %vm490, %v1379, %v1378
        %v1382 = vadd.f32 %v1381, %v233
        %v1383 = vadd.f32 %v1380, %v234
        %v1384 = vmax.f32 %v1376, %v1382
        %v1385 = vmax.f32 %v1377, %v1383
        %1386 = vrot.lane.b32.xlu0 %v1292, 16
        %v1387 = vpop.permute.xlu0 %1386
        %v1388 = vsel %vm276, %v1387, %v1292
        %1389 = vrot.lane.b32.xlu0 %v1293, 16
        %v1390 = vpop.permute.xlu0 %1389
        %v1391 = vsel %vm276, %v1390, %v1293
        %1392 = vrot.lane.b32.xlu0 %v1388, 16
        %v1393 = vpop.permute.xlu0 %1392
        %1394 = vrot.lane.b32.xlu0 %v1391, 16
        %v1395 = vpop.permute.xlu0 %1394
        %v1396 = vsel %vm276, %v1393, %v1292
        %v1397 = vsel %vm276, %v1395, %v1293
        %v1398 = vadd.f32 %v1396, %v409
        %v1399 = vadd.f32 %v1397, %v409
        %1402 = vrot.lane.b32.xlu0 %v1398, 126
        %v1403 = vpop.permute.xlu0 %1402
        %1404 = vrot.lane.b32.xlu0 %v1399, 126
        %v1405 = vpop.permute.xlu0 %1404
        %v1408 = vmax.f32 %v1292, %v1403
        %v1409 = vmax.f32 %v1293, %v1405
        %v1410 = vadd.f32 %v1396, %v291
        %v1411 = vadd.f32 %v1397, %v291
        %1414 = vrot.lane.b32.xlu0 %v1410, 127
        %v1415 = vpop.permute.xlu0 %1414
        %1416 = vrot.lane.b32.xlu0 %v1411, 127
        %v1417 = vpop.permute.xlu0 %1416
        %v1420 = vmax.f32 %v1408, %v1415
        %v1421 = vmax.f32 %v1409, %v1417
        %v1422 = vadd.f32 %v1396, %v307
        %v1423 = vadd.f32 %v1397, %v307
        %1426 = vrot.lane.b32.xlu0 %v1422, 113
        %v1427 = vpop.permute.xlu0 %1426
        %1428 = vrot.lane.b32.xlu0 %v1423, 113
        %v1429 = vpop.permute.xlu0 %1428
        %v1432 = vmax.f32 %v1420, %v1427
        %v1433 = vmax.f32 %v1421, %v1429
        %v1434 = vadd.f32 %v1396, %v449
        %v1435 = vadd.f32 %v1397, %v449
        %1438 = vrot.lane.b32.xlu0 %v1434, 114
        %v1439 = vpop.permute.xlu0 %1438
        %1440 = vrot.lane.b32.xlu0 %v1435, 114
        %v1441 = vpop.permute.xlu0 %1440
        %v1444 = vmax.f32 %v1432, %v1439
        %v1445 = vmax.f32 %v1433, %v1441
        %v1446 = vrot.slane %v1444, 2
        %v1447 = vrot.slane %v1445, 2
        %v1448 = vsel %vm465, %v1446, %v1447
        %v1449 = vsel %vm465, %v1447, %v1446
        %v1450 = vadd.f32 %v1448, %v237
        %v1451 = vadd.f32 %v1449, %v238
        %v1452 = vmax.f32 %v1444, %v1450
        %v1453 = vmax.f32 %v1445, %v1451
        %v1454 = vrot.slane %v1444, 1
        %v1455 = vrot.slane %v1445, 1
        %v1456 = vsel %vm323, %v1454, %v1455
        %v1457 = vsel %vm323, %v1455, %v1454
        %v1458 = vadd.f32 %v1456, %v225
        %v1459 = vadd.f32 %v1457, %v226
        %v1460 = vmax.f32 %v1452, %v1458
        %v1461 = vmax.f32 %v1453, %v1459
        %v1462 = vrot.slane %v1444, 7
        %v1463 = vrot.slane %v1445, 7
        %v1464 = vsel %vm332, %v1462, %v1463
        %v1465 = vsel %vm332, %v1463, %v1462
        %v1466 = vadd.f32 %v1465, %v221
        %v1467 = vadd.f32 %v1464, %v222
        %v1468 = vmax.f32 %v1460, %v1466
        %v1469 = vmax.f32 %v1461, %v1467
        %v1470 = vrot.slane %v1444, 6
        %v1471 = vrot.slane %v1445, 6
        %v1472 = vsel %vm490, %v1470, %v1471
        %v1473 = vsel %vm490, %v1471, %v1470
        %v1474 = vadd.f32 %v1473, %v233
        %v1475 = vadd.f32 %v1472, %v234
        %v1476 = vmax.f32 %v1468, %v1474
        %v1477 = vmax.f32 %v1469, %v1475
        %v1478 = vmul.f32 %v1238, %v1476
        %v1479 = vmul.f32 %v1239, %v1477
        %v1480 = vsel %vm245, %v1478, 0.0
        %v1481 = vsel %vm245, %v1479, 0.0
        %v1482 = vadd.f32 %v1480, %v1481
        %1483 = vadd.xlane.f32.xlu0 %v1482
        %v1484 = vpop.xlane.xlu0 %1483
        %v1485 = vrot.slane %v1484, 4
        %v1486 = vadd.f32 %v1484, %v1485
        %v1487 = vrot.slane %v1486, 2
        %v1488 = vadd.f32 %v1486, %v1487
        %v1489 = vrot.slane %v1488, 1
        %v1490 = vadd.f32 %v1488, %v1489
        %s1491 = vtos %v1490
        %v1492 = vstv %s1491
        %v1493 = vsel %vm245, %v1238, 0.0
        %v1494 = vsel %vm245, %v1239, 0.0
        %v1495 = vadd.f32 %v1493, %v1494
        %1496 = vadd.xlane.f32.xlu0 %v1495
        %v1497 = vpop.xlane.xlu0 %1496
        %v1498 = vrot.slane %v1497, 4
        %v1499 = vadd.f32 %v1497, %v1498
        %v1500 = vrot.slane %v1499, 2
        %v1501 = vadd.f32 %v1499, %v1500
        %v1502 = vrot.slane %v1501, 1
        %v1503 = vadd.f32 %v1501, %v1502
        %s1504 = vtos %v1503
        %v1505 = vstv %s1504
        %v1506 = vadd.f32 %v1505, 1e-07
        %v1507 = vrcp.pop %v1506
        %v1508 = vmul.f32 %v1506, %v1507
        %v1509 = vsub.f32 1.0, %v1508
        %v1510 = vmul.f32 %v1507, %v1509
        %v1511 = vadd.f32 %v1507, %v1510
        %vm1512 = vweird.f32 %v1506
        %vm1513 = vweird.f32 %v1507
        %vm1514 = vmor %vm1512, %vm1513
        %v1515 = vsel %vm1514, %v1507, %v1511
        %v1516 = vand.u32 2147483647, %v1506
        %vm1517 = vcmp.eq.f32.partialorder %v1516, 8.507059e+37
        %v1518 = vand.u32 %v1506, 2147483648
        %v1519 = vor.u32 1.1754944e-38, %v1518
        %v1520 = vsel %vm1517, %v1519, %v1515
        %v1521 = vmul.f32 %v1492, %v1520
        %v1522 = vmul.f32 %v1384, %v1292
        %v1523 = vmul.f32 %v1385, %v1293
        %v1524 = vsel %vm245, %v1522, 0.0
        %v1525 = vsel %vm245, %v1523, 0.0
        %v1526 = vadd.f32 %v1524, %v1525
        %1527 = vadd.xlane.f32.xlu0 %v1526
        %v1528 = vpop.xlane.xlu0 %1527
        %v1529 = vrot.slane %v1528, 4
        %v1530 = vadd.f32 %v1528, %v1529
        %v1531 = vrot.slane %v1530, 2
        %v1532 = vadd.f32 %v1530, %v1531
        %v1533 = vrot.slane %v1532, 1
        %v1534 = vadd.f32 %v1532, %v1533
        %s1535 = vtos %v1534
        %v1536 = vstv %s1535
        %v1537 = vsel %vm245, %v1292, 0.0
        %v1538 = vsel %vm245, %v1293, 0.0
        %v1539 = vadd.f32 %v1537, %v1538
        %1540 = vadd.xlane.f32.xlu0 %v1539
        %v1541 = vpop.xlane.xlu0 %1540
        %v1542 = vrot.slane %v1541, 4
        %v1543 = vadd.f32 %v1541, %v1542
        %v1544 = vrot.slane %v1543, 2
        %v1545 = vadd.f32 %v1543, %v1544
        %v1546 = vrot.slane %v1545, 1
        %v1547 = vadd.f32 %v1545, %v1546
        %s1548 = vtos %v1547
        %v1549 = vstv %s1548
        %v1550 = vadd.f32 %v1549, 1e-07
        %v1551 = vrcp.pop %v1550
        %v1552 = vmul.f32 %v1550, %v1551
        %v1553 = vsub.f32 1.0, %v1552
        %v1554 = vmul.f32 %v1551, %v1553
        %v1555 = vadd.f32 %v1551, %v1554
        %vm1556 = vweird.f32 %v1550
        %vm1557 = vweird.f32 %v1551
        %vm1558 = vmor %vm1556, %vm1557
        %v1559 = vsel %vm1558, %v1551, %v1555
        %v1560 = vand.u32 2147483647, %v1550
        %vm1561 = vcmp.eq.f32.partialorder %v1560, 8.507059e+37
        %v1562 = vand.u32 %v1550, 2147483648
        %v1563 = vor.u32 1.1754944e-38, %v1562
        %v1564 = vsel %vm1561, %v1563, %v1559
        %v1565 = vmul.f32 %v1536, %v1564
        %v1566 = vmul.f32 %v1521, 2.0
        %v1567 = vmul.f32 %v1566, %v1565
        %v1568 = vadd.f32 %v1521, %v1565
        %v1569 = vadd.f32 %v1568, 1e-07
        %v1570 = vrcp.pop %v1569
        %v1571 = vmul.f32 %v1569, %v1570
        %v1572 = vsub.f32 1.0, %v1571
        %v1573 = vmul.f32 %v1570, %v1572
        %v1574 = vadd.f32 %v1570, %v1573
        %vm1575 = vweird.f32 %v1569
        %vm1576 = vweird.f32 %v1570
        %vm1577 = vmor %vm1575, %vm1576
        %v1578 = vsel %vm1577, %v1570, %v1574
        %v1579 = vand.u32 2147483647, %v1569
        %vm1580 = vcmp.eq.f32.partialorder %v1579, 8.507059e+37
        %v1581 = vand.u32 %v1569, 2147483648
        %v1582 = vor.u32 1.1754944e-38, %v1581
        %v1583 = vsel %vm1580, %v1582, %v1578
        %v1584 = vmul.f32 %v1567, %v1583
        %v1585 = vstv %s1167
        %1586 = vst.msk [vmem:[%s209 + $0x2] sm:$0x1] %vm697, %v1585
        %v1587 = vstv %s1181
        %1588 = vst.msk [vmem:[%s209 + $0x2] sm:$0x1] %vm700, %v1587
        %v1589 = vsub.f32 1.0, %v1584
        %1590 = vst.msk [vmem:[%s209 + $0x2] sm:$0x1] %vm703, %v1589
        %s1591 = scalar_lea.vmem %s168, 48 [#allocation2]
        %v1592 = vld [vmem:[%s1591] sm:$0xff]
        %v1593 = vld [vmem:[%s1591 + $0x8] sm:$0xff]
        %s1594 = scalar_lea.vmem %s178, 48 [#allocation4]
        %v1595 = vld [vmem:[%s1594] sm:$0xff]
        %v1596 = vld [vmem:[%s1594 + $0x8] sm:$0xff]
        %v1597 = vmul.f32 %v1592, %v1595
        %v1598 = vmul.f32 %v1593, %v1596
        %v1599 = vsel %vm245, %v1597, 0.0
        %v1600 = vsel %vm245, %v1598, 0.0
        %v1601 = vadd.f32 %v1599, %v1600
        %1602 = vadd.xlane.f32.xlu0 %v1601
        %v1603 = vpop.xlane.xlu0 %1602
        %v1604 = vrot.slane %v1603, 4
        %v1605 = vadd.f32 %v1603, %v1604
        %v1606 = vrot.slane %v1605, 2
        %v1607 = vadd.f32 %v1605, %v1606
        %v1608 = vrot.slane %v1607, 1
        %v1609 = vadd.f32 %v1607, %v1608
        %s1610 = vtos %v1609
        %v1611 = vadd.f32 %v1592, %v1595
        %v1612 = vadd.f32 %v1593, %v1596
        %v1613 = vsel %vm245, %v1611, 0.0
        %v1614 = vsel %vm245, %v1612, 0.0
        %v1615 = vadd.f32 %v1613, %v1614
        %1616 = vadd.xlane.f32.xlu0 %v1615
        %v1617 = vpop.xlane.xlu0 %1616
        %v1618 = vrot.slane %v1617, 4
        %v1619 = vadd.f32 %v1617, %v1618
        %v1620 = vrot.slane %v1619, 2
        %v1621 = vadd.f32 %v1619, %v1620
        %v1622 = vrot.slane %v1621, 1
        %v1623 = vadd.f32 %v1621, %v1622
        %s1624 = vtos %v1623
        %v1625 = vsub.f32 1.0, %v1592
        %v1626 = vsub.f32 1.0, %v1593
        %v1627 = vsub.f32 1.0, %v1595
        %v1628 = vsub.f32 1.0, %v1596
        %1629 = vrot.lane.b32.xlu0 %v1625, 16
        %v1630 = vpop.permute.xlu0 %1629
        %v1631 = vsel %vm276, %v1630, %v1625
        %1632 = vrot.lane.b32.xlu0 %v1626, 16
        %v1633 = vpop.permute.xlu0 %1632
        %v1634 = vsel %vm276, %v1633, %v1626
        %1635 = vrot.lane.b32.xlu0 %v1631, 16
        %v1636 = vpop.permute.xlu0 %1635
        %1637 = vrot.lane.b32.xlu0 %v1634, 16
        %v1638 = vpop.permute.xlu0 %1637
        %v1639 = vsel %vm276, %v1636, %v1625
        %v1640 = vsel %vm276, %v1638, %v1626
        %v1641 = vadd.f32 %v1639, %v291
        %v1642 = vadd.f32 %v1640, %v291
        %1645 = vrot.lane.b32.xlu0 %v1641, 127
        %v1646 = vpop.permute.xlu0 %1645
        %1647 = vrot.lane.b32.xlu0 %v1642, 127
        %v1648 = vpop.permute.xlu0 %1647
        %v1651 = vmax.f32 %v1625, %v1646
        %v1652 = vmax.f32 %v1626, %v1648
        %v1653 = vadd.f32 %v1639, %v307
        %v1654 = vadd.f32 %v1640, %v307
        %1657 = vrot.lane.b32.xlu0 %v1653, 113
        %v1658 = vpop.permute.xlu0 %1657
        %1659 = vrot.lane.b32.xlu0 %v1654, 113
        %v1660 = vpop.permute.xlu0 %1659
        %v1663 = vmax.f32 %v1651, %v1658
        %v1664 = vmax.f32 %v1652, %v1660
        %v1665 = vrot.slane %v1663, 1
        %v1666 = vrot.slane %v1664, 1
        %v1667 = vsel %vm323, %v1665, %v1666
        %v1668 = vsel %vm323, %v1666, %v1665
        %v1669 = vadd.f32 %v1667, %v225
        %v1670 = vadd.f32 %v1668, %v226
        %v1671 = vmax.f32 %v1663, %v1669
        %v1672 = vmax.f32 %v1664, %v1670
        %v1673 = vrot.slane %v1663, 7
        %v1674 = vrot.slane %v1664, 7
        %v1675 = vsel %vm332, %v1673, %v1674
        %v1676 = vsel %vm332, %v1674, %v1673
        %v1677 = vadd.f32 %v1676, %v221
        %v1678 = vadd.f32 %v1675, %v222
        %v1679 = vmax.f32 %v1671, %v1677
        %v1680 = vmax.f32 %v1672, %v1678
        %v1681 = vsub.f32 %v1679, %v1625
        %v1682 = vsub.f32 %v1680, %v1626
        %1683 = vrot.lane.b32.xlu0 %v1627, 16
        %v1684 = vpop.permute.xlu0 %1683
        %v1685 = vsel %vm276, %v1684, %v1627
        %1686 = vrot.lane.b32.xlu0 %v1628, 16
        %v1687 = vpop.permute.xlu0 %1686
        %v1688 = vsel %vm276, %v1687, %v1628
        %1689 = vrot.lane.b32.xlu0 %v1685, 16
        %v1690 = vpop.permute.xlu0 %1689
        %1691 = vrot.lane.b32.xlu0 %v1688, 16
        %v1692 = vpop.permute.xlu0 %1691
        %v1693 = vsel %vm276, %v1690, %v1627
        %v1694 = vsel %vm276, %v1692, %v1628
        %v1695 = vadd.f32 %v1693, %v291
        %v1696 = vadd.f32 %v1694, %v291
        %1699 = vrot.lane.b32.xlu0 %v1695, 127
        %v1700 = vpop.permute.xlu0 %1699
        %1701 = vrot.lane.b32.xlu0 %v1696, 127
        %v1702 = vpop.permute.xlu0 %1701
        %v1705 = vmax.f32 %v1627, %v1700
        %v1706 = vmax.f32 %v1628, %v1702
        %v1707 = vadd.f32 %v1693, %v307
        %v1708 = vadd.f32 %v1694, %v307
        %1711 = vrot.lane.b32.xlu0 %v1707, 113
        %v1712 = vpop.permute.xlu0 %1711
        %1713 = vrot.lane.b32.xlu0 %v1708, 113
        %v1714 = vpop.permute.xlu0 %1713
        %v1717 = vmax.f32 %v1705, %v1712
        %v1718 = vmax.f32 %v1706, %v1714
        %v1719 = vrot.slane %v1717, 1
        %v1720 = vrot.slane %v1718, 1
        %v1721 = vsel %vm323, %v1719, %v1720
        %v1722 = vsel %vm323, %v1720, %v1719
        %v1723 = vadd.f32 %v1721, %v225
        %v1724 = vadd.f32 %v1722, %v226
        %v1725 = vmax.f32 %v1717, %v1723
        %v1726 = vmax.f32 %v1718, %v1724
        %v1727 = vrot.slane %v1717, 7
        %v1728 = vrot.slane %v1718, 7
        %v1729 = vsel %vm332, %v1727, %v1728
        %v1730 = vsel %vm332, %v1728, %v1727
        %v1731 = vadd.f32 %v1730, %v221
        %v1732 = vadd.f32 %v1729, %v222
        %v1733 = vmax.f32 %v1725, %v1731
        %v1734 = vmax.f32 %v1726, %v1732
        %v1735 = vsub.f32 %v1733, %v1627
        %v1736 = vsub.f32 %v1734, %v1628
        %1737 = vrot.lane.b32.xlu0 %v1681, 16
        %v1738 = vpop.permute.xlu0 %1737
        %v1739 = vsel %vm276, %v1738, %v1681
        %1740 = vrot.lane.b32.xlu0 %v1682, 16
        %v1741 = vpop.permute.xlu0 %1740
        %v1742 = vsel %vm276, %v1741, %v1682
        %1743 = vrot.lane.b32.xlu0 %v1739, 16
        %v1744 = vpop.permute.xlu0 %1743
        %1745 = vrot.lane.b32.xlu0 %v1742, 16
        %v1746 = vpop.permute.xlu0 %1745
        %v1747 = vsel %vm276, %v1744, %v1681
        %v1748 = vsel %vm276, %v1746, %v1682
        %v1749 = vadd.f32 %v1747, %v409
        %v1750 = vadd.f32 %v1748, %v409
        %1753 = vrot.lane.b32.xlu0 %v1749, 126
        %v1754 = vpop.permute.xlu0 %1753
        %1755 = vrot.lane.b32.xlu0 %v1750, 126
        %v1756 = vpop.permute.xlu0 %1755
        %v1759 = vmax.f32 %v1681, %v1754
        %v1760 = vmax.f32 %v1682, %v1756
        %v1761 = vadd.f32 %v1747, %v291
        %v1762 = vadd.f32 %v1748, %v291
        %1765 = vrot.lane.b32.xlu0 %v1761, 127
        %v1766 = vpop.permute.xlu0 %1765
        %1767 = vrot.lane.b32.xlu0 %v1762, 127
        %v1768 = vpop.permute.xlu0 %1767
        %v1771 = vmax.f32 %v1759, %v1766
        %v1772 = vmax.f32 %v1760, %v1768
        %v1773 = vadd.f32 %v1747, %v307
        %v1774 = vadd.f32 %v1748, %v307
        %1777 = vrot.lane.b32.xlu0 %v1773, 113
        %v1778 = vpop.permute.xlu0 %1777
        %1779 = vrot.lane.b32.xlu0 %v1774, 113
        %v1780 = vpop.permute.xlu0 %1779
        %v1783 = vmax.f32 %v1771, %v1778
        %v1784 = vmax.f32 %v1772, %v1780
        %v1785 = vadd.f32 %v1747, %v449
        %v1786 = vadd.f32 %v1748, %v449
        %1789 = vrot.lane.b32.xlu0 %v1785, 114
        %v1790 = vpop.permute.xlu0 %1789
        %1791 = vrot.lane.b32.xlu0 %v1786, 114
        %v1792 = vpop.permute.xlu0 %1791
        %v1795 = vmax.f32 %v1783, %v1790
        %v1796 = vmax.f32 %v1784, %v1792
        %v1797 = vrot.slane %v1795, 2
        %v1798 = vrot.slane %v1796, 2
        %v1799 = vsel %vm465, %v1797, %v1798
        %v1800 = vsel %vm465, %v1798, %v1797
        %v1801 = vadd.f32 %v1799, %v237
        %v1802 = vadd.f32 %v1800, %v238
        %v1803 = vmax.f32 %v1795, %v1801
        %v1804 = vmax.f32 %v1796, %v1802
        %v1805 = vrot.slane %v1795, 1
        %v1806 = vrot.slane %v1796, 1
        %v1807 = vsel %vm323, %v1805, %v1806
        %v1808 = vsel %vm323, %v1806, %v1805
        %v1809 = vadd.f32 %v1807, %v225
        %v1810 = vadd.f32 %v1808, %v226
        %v1811 = vmax.f32 %v1803, %v1809
        %v1812 = vmax.f32 %v1804, %v1810
        %v1813 = vrot.slane %v1795, 7
        %v1814 = vrot.slane %v1796, 7
        %v1815 = vsel %vm332, %v1813, %v1814
        %v1816 = vsel %vm332, %v1814, %v1813
        %v1817 = vadd.f32 %v1816, %v221
        %v1818 = vadd.f32 %v1815, %v222
        %v1819 = vmax.f32 %v1811, %v1817
        %v1820 = vmax.f32 %v1812, %v1818
        %v1821 = vrot.slane %v1795, 6
        %v1822 = vrot.slane %v1796, 6
        %v1823 = vsel %vm490, %v1821, %v1822
        %v1824 = vsel %vm490, %v1822, %v1821
        %v1825 = vadd.f32 %v1824, %v233
        %v1826 = vadd.f32 %v1823, %v234
        %v1827 = vmax.f32 %v1819, %v1825
        %v1828 = vmax.f32 %v1820, %v1826
        %1829 = vrot.lane.b32.xlu0 %v1735, 16
        %v1830 = vpop.permute.xlu0 %1829
        %v1831 = vsel %vm276, %v1830, %v1735
        %1832 = vrot.lane.b32.xlu0 %v1736, 16
        %v1833 = vpop.permute.xlu0 %1832
        %v1834 = vsel %vm276, %v1833, %v1736
        %1835 = vrot.lane.b32.xlu0 %v1831, 16
        %v1836 = vpop.permute.xlu0 %1835
        %1837 = vrot.lane.b32.xlu0 %v1834, 16
        %v1838 = vpop.permute.xlu0 %1837
        %v1839 = vsel %vm276, %v1836, %v1735
        %v1840 = vsel %vm276, %v1838, %v1736
        %v1841 = vadd.f32 %v1839, %v409
        %v1842 = vadd.f32 %v1840, %v409
        %1845 = vrot.lane.b32.xlu0 %v1841, 126
        %v1846 = vpop.permute.xlu0 %1845
        %1847 = vrot.lane.b32.xlu0 %v1842, 126
        %v1848 = vpop.permute.xlu0 %1847
        %v1851 = vmax.f32 %v1735, %v1846
        %v1852 = vmax.f32 %v1736, %v1848
        %v1853 = vadd.f32 %v1839, %v291
        %v1854 = vadd.f32 %v1840, %v291
        %1857 = vrot.lane.b32.xlu0 %v1853, 127
        %v1858 = vpop.permute.xlu0 %1857
        %1859 = vrot.lane.b32.xlu0 %v1854, 127
        %v1860 = vpop.permute.xlu0 %1859
        %v1863 = vmax.f32 %v1851, %v1858
        %v1864 = vmax.f32 %v1852, %v1860
        %v1865 = vadd.f32 %v1839, %v307
        %v1866 = vadd.f32 %v1840, %v307
        %1869 = vrot.lane.b32.xlu0 %v1865, 113
        %v1870 = vpop.permute.xlu0 %1869
        %1871 = vrot.lane.b32.xlu0 %v1866, 113
        %v1872 = vpop.permute.xlu0 %1871
        %v1875 = vmax.f32 %v1863, %v1870
        %v1876 = vmax.f32 %v1864, %v1872
        %v1877 = vadd.f32 %v1839, %v449
        %v1878 = vadd.f32 %v1840, %v449
        %1881 = vrot.lane.b32.xlu0 %v1877, 114
        %v1882 = vpop.permute.xlu0 %1881
        %1883 = vrot.lane.b32.xlu0 %v1878, 114
        %v1884 = vpop.permute.xlu0 %1883
        %v1887 = vmax.f32 %v1875, %v1882
        %v1888 = vmax.f32 %v1876, %v1884
        %v1889 = vrot.slane %v1887, 2
        %v1890 = vrot.slane %v1888, 2
        %v1891 = vsel %vm465, %v1889, %v1890
        %v1892 = vsel %vm465, %v1890, %v1889
        %v1893 = vadd.f32 %v1891, %v237
        %v1894 = vadd.f32 %v1892, %v238
        %v1895 = vmax.f32 %v1887, %v1893
        %v1896 = vmax.f32 %v1888, %v1894
        %v1897 = vrot.slane %v1887, 1
        %v1898 = vrot.slane %v1888, 1
        %v1899 = vsel %vm323, %v1897, %v1898
        %v1900 = vsel %vm323, %v1898, %v1897
        %v1901 = vadd.f32 %v1899, %v225
        %v1902 = vadd.f32 %v1900, %v226
        %v1903 = vmax.f32 %v1895, %v1901
        %v1904 = vmax.f32 %v1896, %v1902
        %v1905 = vrot.slane %v1887, 7
        %v1906 = vrot.slane %v1888, 7
        %v1907 = vsel %vm332, %v1905, %v1906
        %v1908 = vsel %vm332, %v1906, %v1905
        %v1909 = vadd.f32 %v1908, %v221
        %v1910 = vadd.f32 %v1907, %v222
        %v1911 = vmax.f32 %v1903, %v1909
        %v1912 = vmax.f32 %v1904, %v1910
        %v1913 = vrot.slane %v1887, 6
        %v1914 = vrot.slane %v1888, 6
        %v1915 = vsel %vm490, %v1913, %v1914
        %v1916 = vsel %vm490, %v1914, %v1913
        %v1917 = vadd.f32 %v1916, %v233
        %v1918 = vadd.f32 %v1915, %v234
        %v1919 = vmax.f32 %v1911, %v1917
        %v1920 = vmax.f32 %v1912, %v1918
        %v1921 = vmul.f32 %v1681, %v1919
        %v1922 = vmul.f32 %v1682, %v1920
        %v1923 = vsel %vm245, %v1921, 0.0
        %v1924 = vsel %vm245, %v1922, 0.0
        %v1925 = vadd.f32 %v1923, %v1924
        %1926 = vadd.xlane.f32.xlu0 %v1925
        %v1927 = vpop.xlane.xlu0 %1926
        %v1928 = vrot.slane %v1927, 4
        %v1929 = vadd.f32 %v1927, %v1928
        %v1930 = vrot.slane %v1929, 2
        %v1931 = vadd.f32 %v1929, %v1930
        %v1932 = vrot.slane %v1931, 1
        %v1933 = vadd.f32 %v1931, %v1932
        %s1934 = vtos %v1933
        %v1935 = vstv %s1934
        %v1936 = vsel %vm245, %v1681, 0.0
        %v1937 = vsel %vm245, %v1682, 0.0
        %v1938 = vadd.f32 %v1936, %v1937
        %1939 = vadd.xlane.f32.xlu0 %v1938
        %v1940 = vpop.xlane.xlu0 %1939
        %v1941 = vrot.slane %v1940, 4
        %v1942 = vadd.f32 %v1940, %v1941
        %v1943 = vrot.slane %v1942, 2
        %v1944 = vadd.f32 %v1942, %v1943
        %v1945 = vrot.slane %v1944, 1
        %v1946 = vadd.f32 %v1944, %v1945
        %s1947 = vtos %v1946
        %v1948 = vstv %s1947
        %v1949 = vadd.f32 %v1948, 1e-07
        %v1950 = vrcp.pop %v1949
        %v1951 = vmul.f32 %v1949, %v1950
        %v1952 = vsub.f32 1.0, %v1951
        %v1953 = vmul.f32 %v1950, %v1952
        %v1954 = vadd.f32 %v1950, %v1953
        %vm1955 = vweird.f32 %v1949
        %vm1956 = vweird.f32 %v1950
        %vm1957 = vmor %vm1955, %vm1956
        %v1958 = vsel %vm1957, %v1950, %v1954
        %v1959 = vand.u32 2147483647, %v1949
        %vm1960 = vcmp.eq.f32.partialorder %v1959, 8.507059e+37
        %v1961 = vand.u32 %v1949, 2147483648
        %v1962 = vor.u32 1.1754944e-38, %v1961
        %v1963 = vsel %vm1960, %v1962, %v1958
        %v1964 = vmul.f32 %v1935, %v1963
        %v1965 = vmul.f32 %v1827, %v1735
        %v1966 = vmul.f32 %v1828, %v1736
        %v1967 = vsel %vm245, %v1965, 0.0
        %v1968 = vsel %vm245, %v1966, 0.0
        %v1969 = vadd.f32 %v1967, %v1968
        %1970 = vadd.xlane.f32.xlu0 %v1969
        %v1971 = vpop.xlane.xlu0 %1970
        %v1972 = vrot.slane %v1971, 4
        %v1973 = vadd.f32 %v1971, %v1972
        %v1974 = vrot.slane %v1973, 2
        %v1975 = vadd.f32 %v1973, %v1974
        %v1976 = vrot.slane %v1975, 1
        %v1977 = vadd.f32 %v1975, %v1976
        %s1978 = vtos %v1977
        %v1979 = vstv %s1978
        %v1980 = vsel %vm245, %v1735, 0.0
        %v1981 = vsel %vm245, %v1736, 0.0
        %v1982 = vadd.f32 %v1980, %v1981
        %1983 = vadd.xlane.f32.xlu0 %v1982
        %v1984 = vpop.xlane.xlu0 %1983
        %v1985 = vrot.slane %v1984, 4
        %v1986 = vadd.f32 %v1984, %v1985
        %v1987 = vrot.slane %v1986, 2
        %v1988 = vadd.f32 %v1986, %v1987
        %v1989 = vrot.slane %v1988, 1
        %v1990 = vadd.f32 %v1988, %v1989
        %s1991 = vtos %v1990
        %v1992 = vstv %s1991
        %v1993 = vadd.f32 %v1992, 1e-07
        %v1994 = vrcp.pop %v1993
        %v1995 = vmul.f32 %v1993, %v1994
        %v1996 = vsub.f32 1.0, %v1995
        %v1997 = vmul.f32 %v1994, %v1996
        %v1998 = vadd.f32 %v1994, %v1997
        %vm1999 = vweird.f32 %v1993
        %vm2000 = vweird.f32 %v1994
        %vm2001 = vmor %vm1999, %vm2000
        %v2002 = vsel %vm2001, %v1994, %v1998
        %v2003 = vand.u32 2147483647, %v1993
        %vm2004 = vcmp.eq.f32.partialorder %v2003, 8.507059e+37
        %v2005 = vand.u32 %v1993, 2147483648
        %v2006 = vor.u32 1.1754944e-38, %v2005
        %v2007 = vsel %vm2004, %v2006, %v2002
        %v2008 = vmul.f32 %v1979, %v2007
        %v2009 = vmul.f32 %v1964, 2.0
        %v2010 = vmul.f32 %v2009, %v2008
        %v2011 = vadd.f32 %v1964, %v2008
        %v2012 = vadd.f32 %v2011, 1e-07
        %v2013 = vrcp.pop %v2012
        %v2014 = vmul.f32 %v2012, %v2013
        %v2015 = vsub.f32 1.0, %v2014
        %v2016 = vmul.f32 %v2013, %v2015
        %v2017 = vadd.f32 %v2013, %v2016
        %vm2018 = vweird.f32 %v2012
        %vm2019 = vweird.f32 %v2013
        %vm2020 = vmor %vm2018, %vm2019
        %v2021 = vsel %vm2020, %v2013, %v2017
        %v2022 = vand.u32 2147483647, %v2012
        %vm2023 = vcmp.eq.f32.partialorder %v2022, 8.507059e+37
        %v2024 = vand.u32 %v2012, 2147483648
        %v2025 = vor.u32 1.1754944e-38, %v2024
        %v2026 = vsel %vm2023, %v2025, %v2021
        %v2027 = vmul.f32 %v2010, %v2026
        %v2028 = vstv %s1610
        %2029 = vst.msk [vmem:[%s209 + $0x3] sm:$0x1] %vm697, %v2028
        %v2030 = vstv %s1624
        %2031 = vst.msk [vmem:[%s209 + $0x3] sm:$0x1] %vm700, %v2030
        %v2032 = vsub.f32 1.0, %v2027
        %2033 = vst.msk [vmem:[%s209 + $0x3] sm:$0x1] %vm703, %v2032
        %p2034 = scmp.lt.s32.totalorder %s19, 1
        %s2035 = scalar_select %p2034, %s19, 1
        %s2036 = smul.addr %s2035, 4
        %s2037 = scalar_lea.vmem %s2, %s2036
        // Predicated region
        $region37: #{tpu_custom_call.1} parent=27 // pred_check
          %p2038 = pneg %p89
        $region38: #{tpu_custom_call.1} parent=27 // pred_check_branch
          %2040 = sbr.rel (%p2038) target = $region40
        $region39: #{tpu_custom_call.1} parent=27 // pred_region
          _
        $region40: #{tpu_custom_call.1} parent=27 // pred_fallthru
          _
      $region28: #{tpu_custom_call.1} parent=5 // pred_fallthru
        _
      %p2041 = scmp.le.s32.totalorder 2, %s14
      // Predicated region
      $region41: #{tpu_custom_call.1} parent=5 // pred_check
        %p2042 = pneg %p2041
      $region42: #{tpu_custom_call.1} parent=5 // pred_check_branch
        %2044 = sbr.rel (%p2042) target = $region44
      $region43: #{tpu_custom_call.1} parent=5 // pred_region
        %s2045 = ssub.s32 %s14, 2
        // Predicated region
        $region45: #{tpu_custom_call.1} parent=43 // pred_check
          %p2046 = pneg %p95
        $region46: #{tpu_custom_call.1} parent=43 // pred_check_branch
          %2048 = sbr.rel (%p2046) target = $region48
        $region47: #{tpu_custom_call.1} parent=43 // pred_region
          %p2049 = scmp.lt.s32.totalorder %s20, 1
          %s2050 = scalar_select %p2049, %s20, 1
          %s2051 = smul.addr %s2050, 4
          %s2052 = scalar_lea.vmem %s2, %s2051
        $region48: #{tpu_custom_call.1} parent=43 // pred_fallthru
          _
      $region44: #{tpu_custom_call.1} parent=5 // pred_fallthru
        _
    $region6: #{tpu_custom_call.1} parent=1 // loop_footer
      %s18 = sadd.s32 1, %s14
    $region7: #{tpu_custom_call.1} parent=1 // loop_footer_branch
      %13 = sbr.rel target = $region3
    $region8: #{tpu_custom_call.1} parent=1 // loop_exit
      _
    %2053 = vsyncpa [#allocation3], 1
    %s2054 = scalar_lea.sflag [#allocation3], 1
    %2055 = vsyncpa %s2054, 1
    %2056 = vsyncpa [#allocation5], 1
    %s2057 = scalar_lea.sflag [#allocation5], 1
    %2058 = vsyncpa %s2057, 1

</llo_original>
